<compile_context>
chip_gen: v7x
topology: tpu7x:2x2x1
jax: 0.10.0
libtpu: 0.0.40
codegen_flags: <defaults>
</compile_context>

<pallas_src>
import functools

import jax
import jax.numpy as jnp
from jax.experimental import pallas as pl
from jax.experimental.pallas import tpu as pltpu

EPS = 1e-7


def _round_up(a, b):
    return ((a + b - 1) // b) * b


def _vmem_budget_bytes():
    """Generation-aware VMEM budget, leaving headroom for Mosaic internal scratch."""
    cap = 64 << 20  # conservative default (v7x per-core VMEM)
    try:
        cap = int(getattr(pltpu.get_tpu_info(), "vmem_capacity_bytes", cap))
    except Exception:
        pass
    # 128 MiB (v5e/v6e) -> 96 MiB budget; 64 MiB (v7x) -> 48 MiB budget.
    return max(32 << 20, min((cap * 3) // 4, cap - (16 << 20)))


# ---------------------------------------------------------------------------
# Pallas kernel: one (m-tile, k-tile) grid step.
# ---------------------------------------------------------------------------
def _stft_loss_kernel(fx_ref, fy_ref, cs_ref, out_ref, *, tm, tk, single_k):
    """fx_ref/fy_ref: (tm, N) bf16 frame tiles (window folded into the basis).
       cs_ref       : (1, N, 2*tk) bf16; cols [0:tk]=cos basis, [tk:2tk]=sin basis.
       out_ref      : (1, 24, tk) f32 partial sums (accumulated over k tiles):
                      rows 0:8   = sum over M of (y_mag - x_mag)^2
                      rows 8:16  = sum over M of clamp(y_pow, EPS)
                      rows 16:24 = sum over M of |log y_mag - log x_mag|."""
    basis = cs_ref[0]                                                    # (N, 2*tk)
    # Two MXU matmuls against the same resident RHS, f32 accumulation.
    rx = jnp.dot(fx_ref[...], basis, preferred_element_type=jnp.float32)  # (tm, 2*tk)
    ry = jnp.dot(fy_ref[...], basis, preferred_element_type=jnp.float32)

    x_pc = jnp.maximum(rx[:, :tk] * rx[:, :tk] + rx[:, tk:] * rx[:, tk:], EPS)
    y_pc = jnp.maximum(ry[:, :tk] * ry[:, :tk] + ry[:, tk:] * ry[:, tk:], EPS)

    d = jnp.sqrt(y_pc) - jnp.sqrt(x_pc)
    d2 = d * d
    # |log y_mag - log x_mag| = 0.5 * |log(y_pow_c / x_pow_c)| -> one log instead of two.
    lg = 0.5 * jnp.abs(jnp.log(y_pc / x_pc))

    def fold_m(q):
        # (tm, tk) -> (8, tk): sublane-aligned regroup + reduce over the leading dim,
        # i.e. pure VPU vreg adds (no cross-lane XLU reduce, no scalar splat).
        return jnp.sum(q.reshape(tm // 8, 8, tk), axis=0)

    parts = jnp.concatenate([fold_m(d2), fold_m(y_pc), fold_m(lg)], axis=0)  # (24, tk)

    if single_k:
        out_ref[0] = parts
    else:
        @pl.when(pl.program_id(1) == 0)
        def _():
            out_ref[0] = jnp.zeros((24, tk), jnp.float32)

        out_ref[0] = out_ref[0] + parts


# ---------------------------------------------------------------------------
# Host-side glue: framing, window, windowed DFT basis.
# ---------------------------------------------------------------------------
def _hann_window(win_length):
    # torch.hann_window default is periodic=True.
    n = jnp.arange(win_length, dtype=jnp.float32)
    return 0.5 - 0.5 * jnp.cos(2.0 * jnp.pi * n / win_length)


def _frame_signal(x, fft_size, hop_size):
    # torch.stft defaults: center=True, pad_mode='reflect', onesided=True.
    B, T = x.shape
    pad = fft_size // 2
    if T <= pad:
        raise ValueError(
            f"signal length {T} too short for reflect padding with fft_size {fft_size}")
    xp = jnp.pad(x, ((0, 0), (pad, pad)), mode="reflect")
    n_frames = 1 + (xp.shape[1] - fft_size) // hop_size
    idx = (jnp.arange(n_frames)[:, None] * hop_size
           + jnp.arange(fft_size)[None, :])
    frames = xp[:, idx]                              # (B, n_frames, fft_size)
    # TODO(synk): extract frames in-kernel from the raw padded signal (pl.ANY + manual DMA,
    # hop-strided pl.ds reads) to avoid the ~fft/hop x HBM duplication of overlapping frames.
    return frames.reshape(B * n_frames, fft_size)


def _windowed_dft_mats(fft_size, win_length, k_pad):
    win = _hann_window(win_length)
    pad_left = (fft_size - win_length) // 2
    win_full = jnp.zeros((fft_size,), jnp.float32)
    win_full = win_full.at[pad_left:pad_left + win_length].set(win)
    K = fft_size // 2 + 1
    n = jnp.arange(fft_size, dtype=jnp.float32)[:, None]
    k = jnp.arange(K, dtype=jnp.float32)[None, :]
    angle = 2.0 * jnp.pi * n * k / fft_size
    cos_m = jnp.cos(angle) * win_full[:, None]
    sin_m = jnp.sin(angle) * win_full[:, None]       # sign irrelevant (squared)
    cos_m = jnp.pad(cos_m, ((0, 0), (0, k_pad - K)))
    sin_m = jnp.pad(sin_m, ((0, 0), (0, k_pad - K)))
    return cos_m, sin_m


# ---------------------------------------------------------------------------
# Single-resolution STFT loss via pallas_call.
# ---------------------------------------------------------------------------
def stft_loss_single(x, y, fft_size, hop_size, win_length, *, compute_dtype=jnp.bfloat16):
    fx = _frame_signal(x, fft_size, hop_size)
    fy = _frame_signal(y, fft_size, hop_size)
    M, N = fx.shape
    K = fft_size // 2 + 1
    kp128 = _round_up(K, 128)

    vmem_budget = _vmem_budget_bytes()

    # --- M tile: bigger for small ffts (grid-step overhead dominates there). ---
    if N <= 256:
        tm_target = 1024
    elif N <= 512:
        tm_target = 512
    else:
        tm_target = 256
    tm = min(tm_target, _round_up(M, 8))
    # Guarantee >=2 m-tiles so the "parallel" axis can split across v7x's two TensorCores
    # (on single-TC v5e/v6e this costs at most one extra ~0.35us grid step).
    if _round_up(M, tm) // tm < 2 and M > 8:
        tm = _round_up((M + 1) // 2, 8)
    M_pad = _round_up(M, tm)
    num_m = M_pad // tm

    # --- K tile: keep the whole (windowed) DFT basis VMEM-resident when it fits the
    # generation-aware budget (single-buffered, since its block index never changes);
    # otherwise fall back to 512-wide K tiles (basis then re-streamed once per m-tile). ---
    def vmem_est(tk_, resident):
        cs_bytes = N * (2 * tk_) * 2 * (1 if resident else 2)   # bf16 basis tile(s)
        frame_bytes = 2 * 2 * tm * N * 2                        # fx + fy, double-buffered
        out_bytes = 2 * 24 * tk_ * 4                            # out block, double-buffered
        inter_bytes = 12 * tm * tk_ * 4                         # f32 matmul/elementwise temps
        return cs_bytes + frame_bytes + out_bytes + inter_bytes

    if vmem_est(kp128, True) <= vmem_budget:
        tk = kp128
    else:
        tk = 512 if kp128 >= 512 else 128
        while tk > 128 and vmem_est(tk, False) > vmem_budget:
            tk //= 2
    Kp = _round_up(K, tk)
    num_k = Kp // tk
    single_k = (num_k == 1)

    # --- host-side packing (bf16 matmul inputs; no x/y concat) ---
    fx_b = jnp.pad(fx, ((0, M_pad - M), (0, 0))).astype(compute_dtype)   # (M_pad, N)
    fy_b = jnp.pad(fy, ((0, M_pad - M), (0, 0))).astype(compute_dtype)

    cos_m, sin_m = _windowed_dft_mats(fft_size, win_length, Kp)          # (N, Kp) each
    cos_t = cos_m.reshape(N, num_k, tk).transpose(1, 0, 2)
    sin_t = sin_m.reshape(N, num_k, tk).transpose(1, 0, 2)
    cs = jnp.concatenate([cos_t, sin_t], axis=2).astype(compute_dtype)   # (num_k, N, 2*tk)

    kernel = functools.partial(_stft_loss_kernel, tm=tm, tk=tk, single_k=single_k)

    cost = pl.CostEstimate(
        flops=8 * M_pad * N * Kp,                 # two (tm,N)x(N,2tk) dots per step, totalled
        transcendentals=4 * M_pad * Kp,           # 2x sqrt + log + recip per bin
        bytes_accessed=(2 * M_pad * N * 2
                        + N * 2 * Kp * 2 * (1 if single_k else num_m)
                        + num_m * 24 * tk * 4))

    def _call(single_buffer_basis):
        cs_kwargs = {}
        if single_buffer_basis:
            # Basis block index never changes -> no point double-buffering it.
            cs_kwargs["pipeline_mode"] = pl.Buffered(1)
        grid_spec = pltpu.PrefetchScalarGridSpec(
            num_scalar_prefetch=0,
            grid=(num_m, num_k),
            in_specs=[
                pl.BlockSpec((tm, N), lambda i, j: (i, 0)),
                pl.BlockSpec((tm, N), lambda i, j: (i, 0)),
                pl.BlockSpec((1, N, 2 * tk), lambda i, j: (j, 0, 0), **cs_kwargs),
            ],
            out_specs=pl.BlockSpec((1, 24, tk), lambda i, j: (i, 0, 0)),
        )
        return pl.pallas_call(
            kernel,
            out_shape=jax.ShapeDtypeStruct((num_m, 24, tk), jnp.float32),
            grid_spec=grid_spec,
            compiler_params=pltpu.CompilerParams(
                dimension_semantics=("parallel", "arbitrary"),
                vmem_limit_bytes=int(vmem_budget)),
            cost_estimate=cost,
        )(fx_b, fy_b, cs)

    if single_k and hasattr(pl, "Buffered"):
        try:
            partials = _call(True)
        except Exception:
            # Fallback for jax versions without per-BlockSpec pipeline_mode support.
            partials = _call(False)
    else:
        partials = _call(False)

    sum_diff2 = jnp.sum(partials[:, 0:8, :])
    sum_y2 = jnp.sum(partials[:, 8:16, :])
    sum_abs_log = jnp.sum(partials[:, 16:24, :])

    # Zero-padded frame rows / frequency bins contribute exactly EPS each to
    # sum(clamp(y_pow, EPS)) and exactly 0 to the other two sums (padded cells are exact
    # zeros, so bf16 zero x zero -> f32 0.0); remove the deterministic leak here.
    sum_y2 = sum_y2 - jnp.float32((M_pad * Kp - M * K) * EPS)

    sc_loss = jnp.sqrt(sum_diff2) / jnp.sqrt(sum_y2)
    mag_loss = sum_abs_log / jnp.float32(M * K)
    return sc_loss, mag_loss


# ---------------------------------------------------------------------------
# MultiResolutionSTFTLoss forward.
# ---------------------------------------------------------------------------
def multi_resolution_stft_loss(x, y, fft_sizes, hop_sizes, win_lengths):
    assert len(fft_sizes) == len(hop_sizes) == len(win_lengths)
    if x.ndim == 3:
        x = x.reshape(-1, x.shape[2])
        y = y.reshape(-1, y.shape[2])
    sc_total = jnp.float32(0.0)
    mag_total = jnp.float32(0.0)
    for fs, hs, wl in zip(fft_sizes, hop_sizes, win_lengths):
        sc, mag = stft_loss_single(x, y, fs, hs, wl)
        sc_total = sc_total + sc
        mag_total = mag_total + mag
    n = len(fft_sizes)
    return sc_total / n, mag_total / n


# ---------------------------------------------------------------------------
# Pure-JAX reference (f32, rfft) for a loose sanity check.
# ---------------------------------------------------------------------------
def _reference_loss(x, y, fft_sizes, hop_sizes, win_lengths):
    if x.ndim == 3:
        x = x.reshape(-1, x.shape[2])
        y = y.reshape(-1, y.shape[2])
    sc_t, mag_t = 0.0, 0.0
    for fs, hs, wl in zip(fft_sizes, hop_sizes, win_lengths):
        win = _hann_window(wl)
        pad_left = (fs - wl) // 2
        wf = jnp.zeros((fs,), jnp.float32).at[pad_left:pad_left + wl].set(win)

        def _mag(sig):
            fr = _frame_signal(sig, fs, hs)
            spec = jnp.fft.rfft(fr * wf[None, :], n=fs, axis=1)
            p = spec.real ** 2 + spec.imag ** 2
            return jnp.sqrt(jnp.maximum(p, EPS))

        xm, ym = _mag(x), _mag(y)
        sc_t = sc_t + jnp.linalg.norm(ym - xm) / jnp.linalg.norm(ym)
        mag_t = mag_t + jnp.mean(jnp.abs(jnp.log(ym) - jnp.log(xm)))
    n = len(fft_sizes)
    return sc_t / n, mag_t / n


if __name__ == "__main__":
    # Small, deterministic example (module defaults scaled down).
    B, T = 2, 512
    fft_sizes = [64, 128, 256]
    hop_sizes = [16, 32, 64]
    win_lengths = [64, 128, 256]

    key = jax.random.PRNGKey(0)
    kx, ky = jax.random.split(key)
    x = jax.random.normal(kx, (B, T), dtype=jnp.float32)
    y = jax.random.normal(ky, (B, T), dtype=jnp.float32)

    sc_loss, mag_loss = multi_resolution_stft_loss(
        x, y, fft_sizes, hop_sizes, win_lengths)
    sc_loss = jax.block_until_ready(sc_loss)
    mag_loss = jax.block_until_ready(mag_loss)
    assert bool(jnp.isfinite(sc_loss)) and bool(jnp.isfinite(mag_loss))

    # Loose sanity check against an f32 rfft reference (kernel uses bf16 MXU inputs,
    # ~0.1-1% relative magnitude error expected).
    sc_ref, mag_ref = _reference_loss(x, y, fft_sizes, hop_sizes, win_lengths)
    sc_ref = float(jax.block_until_ready(sc_ref))
    mag_ref = float(jax.block_until_ready(mag_ref))
    assert abs(float(sc_loss) - sc_ref) <= 0.1 * abs(sc_ref) + 1e-3
    assert abs(float(mag_loss) - mag_ref) <= 0.1 * abs(mag_ref) + 1e-3

    print("KERNEL_OK")
</pallas_src>

<mosaic_0001>
module attributes {stable_mosaic.version = 11 : i64} {
  func.func @_stft_loss_kernel(%arg0: i32, %arg1: i32, %arg2: memref<40x64xbf16, #tpu.memory_space<vmem>>, %arg3: memref<40x64xbf16, #tpu.memory_space<vmem>>, %arg4: memref<1x64x256xbf16, #tpu.memory_space<vmem>>, %arg5: memref<1x24x128xf32, #tpu.memory_space<vmem>>) attributes {dimension_semantics = [#tpu.dimension_semantics<parallel>, #tpu.dimension_semantics<arbitrary>], iteration_bounds = array<i64: 2, 1>, scalar_prefetch = 0 : i64, scratch_operands = 0 : i64, tpu.core_type = #tpu.core_type<tc>, window_params = [{transform_indices = @transform_0, window_bounds = array<i64: 40, 64>}, {transform_indices = @transform_1, window_bounds = array<i64: 40, 64>}, {pipeline_mode = #tpu.pipeline_mode<synchronous>, transform_indices = @transform_2, window_bounds = array<i64: 1, 64, 256>}, {transform_indices = @transform_3, window_bounds = array<i64: 1, 24, 128>}]} {
    %c0 = arith.constant 0 : index
    %c0_0 = arith.constant 0 : index
    %c0_1 = arith.constant 0 : index
    %0 = vector.load %arg4[%c0, %c0_0, %c0_1] : memref<1x64x256xbf16, #tpu.memory_space<vmem>>, vector<1x64x256xbf16>
    %1 = vector.shape_cast %0 : vector<1x64x256xbf16> to vector<64x256xbf16>
    %c0_2 = arith.constant 0 : index
    %c0_3 = arith.constant 0 : index
    %2 = vector.load %arg2[%c0_2, %c0_3] : memref<40x64xbf16, #tpu.memory_space<vmem>>, vector<40x64xbf16>
    %cst = arith.constant dense<0.000000e+00> : vector<40x256xf32>
    %3 = tpu.matmul %2, %1, %cst {dimension_numbers = #tpu.dot_dimension_numbers<[1], [0], [0], [1], [0, 0, 1, 1], [], []>} : vector<40x64xbf16>, vector<64x256xbf16>, vector<40x256xf32> -> vector<40x256xf32>
    %c0_4 = arith.constant 0 : index
    %c0_5 = arith.constant 0 : index
    %4 = vector.load %arg3[%c0_4, %c0_5] : memref<40x64xbf16, #tpu.memory_space<vmem>>, vector<40x64xbf16>
    %cst_6 = arith.constant dense<0.000000e+00> : vector<40x256xf32>
    %5 = tpu.matmul %4, %1, %cst_6 {dimension_numbers = #tpu.dot_dimension_numbers<[1], [0], [0], [1], [0, 0, 1, 1], [], []>} : vector<40x64xbf16>, vector<64x256xbf16>, vector<40x256xf32> -> vector<40x256xf32>
    %6 = vector.extract_strided_slice %3 {offsets = [0, 0], sizes = [40, 128], strides = [1, 1]} : vector<40x256xf32> to vector<40x128xf32>
    %7 = vector.extract_strided_slice %3 {offsets = [0, 0], sizes = [40, 128], strides = [1, 1]} : vector<40x256xf32> to vector<40x128xf32>
    %8 = arith.mulf %6, %7 : vector<40x128xf32>
    %9 = vector.extract_strided_slice %3 {offsets = [0, 128], sizes = [40, 128], strides = [1, 1]} : vector<40x256xf32> to vector<40x128xf32>
    %10 = vector.extract_strided_slice %3 {offsets = [0, 128], sizes = [40, 128], strides = [1, 1]} : vector<40x256xf32> to vector<40x128xf32>
    %11 = arith.mulf %9, %10 : vector<40x128xf32>
    %12 = arith.addf %8, %11 : vector<40x128xf32>
    %cst_7 = arith.constant 1.000000e-07 : f32
    %13 = vector.broadcast %cst_7 : f32 to vector<40x128xf32>
    %14 = arith.maximumf %12, %13 : vector<40x128xf32>
    %15 = vector.extract_strided_slice %5 {offsets = [0, 0], sizes = [40, 128], strides = [1, 1]} : vector<40x256xf32> to vector<40x128xf32>
    %16 = vector.extract_strided_slice %5 {offsets = [0, 0], sizes = [40, 128], strides = [1, 1]} : vector<40x256xf32> to vector<40x128xf32>
    %17 = arith.mulf %15, %16 : vector<40x128xf32>
    %18 = vector.extract_strided_slice %5 {offsets = [0, 128], sizes = [40, 128], strides = [1, 1]} : vector<40x256xf32> to vector<40x128xf32>
    %19 = vector.extract_strided_slice %5 {offsets = [0, 128], sizes = [40, 128], strides = [1, 1]} : vector<40x256xf32> to vector<40x128xf32>
    %20 = arith.mulf %18, %19 : vector<40x128xf32>
    %21 = arith.addf %17, %20 : vector<40x128xf32>
    %cst_8 = arith.constant 1.000000e-07 : f32
    %22 = vector.broadcast %cst_8 : f32 to vector<40x128xf32>
    %23 = arith.maximumf %21, %22 : vector<40x128xf32>
    %24 = math.sqrt %23 : vector<40x128xf32>
    %25 = math.sqrt %14 : vector<40x128xf32>
    %26 = arith.subf %24, %25 : vector<40x128xf32>
    %27 = arith.mulf %26, %26 : vector<40x128xf32>
    %28 = arith.divf %23, %14 : vector<40x128xf32>
    %29 = math.log %28 : vector<40x128xf32>
    %30 = math.absf %29 : vector<40x128xf32>
    %cst_9 = arith.constant 5.000000e-01 : f32
    %31 = vector.broadcast %cst_9 : f32 to vector<40x128xf32>
    %32 = arith.mulf %31, %30 : vector<40x128xf32>
    %33 = vector.shape_cast %27 : vector<40x128xf32> to vector<5x8x128xf32>
    %cst_10 = arith.constant dense<0.000000e+00> : vector<8x128xf32>
    %34 = vector.multi_reduction <add>, %33, %cst_10 [0] : vector<5x8x128xf32> to vector<8x128xf32>
    %35 = vector.shape_cast %23 : vector<40x128xf32> to vector<5x8x128xf32>
    %cst_11 = arith.constant dense<0.000000e+00> : vector<8x128xf32>
    %36 = vector.multi_reduction <add>, %35, %cst_11 [0] : vector<5x8x128xf32> to vector<8x128xf32>
    %37 = vector.shape_cast %32 : vector<40x128xf32> to vector<5x8x128xf32>
    %cst_12 = arith.constant dense<0.000000e+00> : vector<8x128xf32>
    %38 = vector.multi_reduction <add>, %37, %cst_12 [0] : vector<5x8x128xf32> to vector<8x128xf32>
    %39 = tpu.concatenate %34, %36, %38 in 0 : vector<8x128xf32>, vector<8x128xf32>, vector<8x128xf32> -> vector<24x128xf32>
    %c0_13 = arith.constant 0 : index
    %c0_14 = arith.constant 0 : index
    %c0_15 = arith.constant 0 : index
    %40 = vector.load %arg5[%c0_13, %c0_14, %c0_15] : memref<1x24x128xf32, #tpu.memory_space<vmem>>, vector<1x24x128xf32>
    %41 = vector.shape_cast %40 : vector<1x24x128xf32> to vector<24x128xf32>
    %42 = vector.shape_cast %39 : vector<24x128xf32> to vector<1x24x128xf32>
    tpu.vector_store %arg5[%c0_13, %c0_14, %c0_15], %42 {strides = array<i32>} : memref<1x24x128xf32, #tpu.memory_space<vmem>>, vector<1x24x128xf32>,
    return
  }
  func.func @transform_0(%arg0: i32, %arg1: i32) -> (i32, i32) {
    %c0_i32 = arith.constant 0 : i32
    %c0_i32_0 = arith.constant 0 : i32
    return %arg0, %c0_i32 : i32, i32
  }
  func.func @transform_1(%arg0: i32, %arg1: i32) -> (i32, i32) {
    %c0_i32 = arith.constant 0 : i32
    %c0_i32_0 = arith.constant 0 : i32
    return %arg0, %c0_i32 : i32, i32
  }
  func.func @transform_2(%arg0: i32, %arg1: i32) -> (i32, i32, i32) {
    %c0_i32 = arith.constant 0 : i32
    %c0_i32_0 = arith.constant 0 : i32
    %c0_i32_1 = arith.constant 0 : i32
    return %arg1, %c0_i32, %c0_i32_0 : i32, i32, i32
  }
  func.func @transform_3(%arg0: i32, %arg1: i32) -> (i32, i32, i32) {
    %c0_i32 = arith.constant 0 : i32
    %c0_i32_0 = arith.constant 0 : i32
    %c0_i32_1 = arith.constant 0 : i32
    return %arg0, %c0_i32, %c0_i32_0 : i32, i32, i32
  }
}

module attributes {stable_mosaic.version = 11 : i64} {
  func.func @_stft_loss_kernel(%arg0: i32, %arg1: i32, %arg2: memref<40x64xbf16, #tpu.memory_space<vmem>>, %arg3: memref<40x64xbf16, #tpu.memory_space<vmem>>, %arg4: memref<1x64x256xbf16, #tpu.memory_space<vmem>>, %arg5: memref<1x24x128xf32, #tpu.memory_space<vmem>>) attributes {dimension_semantics = [#tpu.dimension_semantics<parallel>, #tpu.dimension_semantics<arbitrary>], iteration_bounds = array<i64: 2, 1>, scalar_prefetch = 0 : i64, scratch_operands = 0 : i64, tpu.core_type = #tpu.core_type<tc>, window_params = [{transform_indices = @transform_0, window_bounds = array<i64: 40, 64>}, {transform_indices = @transform_1, window_bounds = array<i64: 40, 64>}, {transform_indices = @transform_2, window_bounds = array<i64: 1, 64, 256>}, {transform_indices = @transform_3, window_bounds = array<i64: 1, 24, 128>}]} {
    %c0 = arith.constant 0 : index
    %c0_0 = arith.constant 0 : index
    %c0_1 = arith.constant 0 : index
    %0 = vector.load %arg4[%c0, %c0_0, %c0_1] : memref<1x64x256xbf16, #tpu.memory_space<vmem>>, vector<1x64x256xbf16>
    %1 = vector.shape_cast %0 : vector<1x64x256xbf16> to vector<64x256xbf16>
    %c0_2 = arith.constant 0 : index
    %c0_3 = arith.constant 0 : index
    %2 = vector.load %arg2[%c0_2, %c0_3] : memref<40x64xbf16, #tpu.memory_space<vmem>>, vector<40x64xbf16>
    %cst = arith.constant dense<0.000000e+00> : vector<40x256xf32>
    %3 = tpu.matmul %2, %1, %cst {dimension_numbers = #tpu.dot_dimension_numbers<[1], [0], [0], [1], [0, 0, 1, 1], [], []>} : vector<40x64xbf16>, vector<64x256xbf16>, vector<40x256xf32> -> vector<40x256xf32>
    %c0_4 = arith.constant 0 : index
    %c0_5 = arith.constant 0 : index
    %4 = vector.load %arg3[%c0_4, %c0_5] : memref<40x64xbf16, #tpu.memory_space<vmem>>, vector<40x64xbf16>
    %cst_6 = arith.constant dense<0.000000e+00> : vector<40x256xf32>
    %5 = tpu.matmul %4, %1, %cst_6 {dimension_numbers = #tpu.dot_dimension_numbers<[1], [0], [0], [1], [0, 0, 1, 1], [], []>} : vector<40x64xbf16>, vector<64x256xbf16>, vector<40x256xf32> -> vector<40x256xf32>
    %6 = vector.extract_strided_slice %3 {offsets = [0, 0], sizes = [40, 128], strides = [1, 1]} : vector<40x256xf32> to vector<40x128xf32>
    %7 = vector.extract_strided_slice %3 {offsets = [0, 0], sizes = [40, 128], strides = [1, 1]} : vector<40x256xf32> to vector<40x128xf32>
    %8 = arith.mulf %6, %7 : vector<40x128xf32>
    %9 = vector.extract_strided_slice %3 {offsets = [0, 128], sizes = [40, 128], strides = [1, 1]} : vector<40x256xf32> to vector<40x128xf32>
    %10 = vector.extract_strided_slice %3 {offsets = [0, 128], sizes = [40, 128], strides = [1, 1]} : vector<40x256xf32> to vector<40x128xf32>
    %11 = arith.mulf %9, %10 : vector<40x128xf32>
    %12 = arith.addf %8, %11 : vector<40x128xf32>
    %cst_7 = arith.constant 1.000000e-07 : f32
    %13 = vector.broadcast %cst_7 : f32 to vector<40x128xf32>
    %14 = arith.maximumf %12, %13 : vector<40x128xf32>
    %15 = vector.extract_strided_slice %5 {offsets = [0, 0], sizes = [40, 128], strides = [1, 1]} : vector<40x256xf32> to vector<40x128xf32>
    %16 = vector.extract_strided_slice %5 {offsets = [0, 0], sizes = [40, 128], strides = [1, 1]} : vector<40x256xf32> to vector<40x128xf32>
    %17 = arith.mulf %15, %16 : vector<40x128xf32>
    %18 = vector.extract_strided_slice %5 {offsets = [0, 128], sizes = [40, 128], strides = [1, 1]} : vector<40x256xf32> to vector<40x128xf32>
    %19 = vector.extract_strided_slice %5 {offsets = [0, 128], sizes = [40, 128], strides = [1, 1]} : vector<40x256xf32> to vector<40x128xf32>
    %20 = arith.mulf %18, %19 : vector<40x128xf32>
    %21 = arith.addf %17, %20 : vector<40x128xf32>
    %cst_8 = arith.constant 1.000000e-07 : f32
    %22 = vector.broadcast %cst_8 : f32 to vector<40x128xf32>
    %23 = arith.maximumf %21, %22 : vector<40x128xf32>
    %24 = math.sqrt %23 : vector<40x128xf32>
    %25 = math.sqrt %14 : vector<40x128xf32>
    %26 = arith.subf %24, %25 : vector<40x128xf32>
    %27 = arith.mulf %26, %26 : vector<40x128xf32>
    %28 = arith.divf %23, %14 : vector<40x128xf32>
    %29 = math.log %28 : vector<40x128xf32>
    %30 = math.absf %29 : vector<40x128xf32>
    %cst_9 = arith.constant 5.000000e-01 : f32
    %31 = vector.broadcast %cst_9 : f32 to vector<40x128xf32>
    %32 = arith.mulf %31, %30 : vector<40x128xf32>
    %33 = vector.shape_cast %27 : vector<40x128xf32> to vector<5x8x128xf32>
    %cst_10 = arith.constant dense<0.000000e+00> : vector<8x128xf32>
    %34 = vector.multi_reduction <add>, %33, %cst_10 [0] : vector<5x8x128xf32> to vector<8x128xf32>
    %35 = vector.shape_cast %23 : vector<40x128xf32> to vector<5x8x128xf32>
    %cst_11 = arith.constant dense<0.000000e+00> : vector<8x128xf32>
    %36 = vector.multi_reduction <add>, %35, %cst_11 [0] : vector<5x8x128xf32> to vector<8x128xf32>
    %37 = vector.shape_cast %32 : vector<40x128xf32> to vector<5x8x128xf32>
    %cst_12 = arith.constant dense<0.000000e+00> : vector<8x128xf32>
    %38 = vector.multi_reduction <add>, %37, %cst_12 [0] : vector<5x8x128xf32> to vector<8x128xf32>
    %39 = tpu.concatenate %34, %36, %38 in 0 : vector<8x128xf32>, vector<8x128xf32>, vector<8x128xf32> -> vector<24x128xf32>
    %c0_13 = arith.constant 0 : index
    %c0_14 = arith.constant 0 : index
    %c0_15 = arith.constant 0 : index
    %40 = vector.load %arg5[%c0_13, %c0_14, %c0_15] : memref<1x24x128xf32, #tpu.memory_space<vmem>>, vector<1x24x128xf32>
    %41 = vector.shape_cast %40 : vector<1x24x128xf32> to vector<24x128xf32>
    %42 = vector.shape_cast %39 : vector<24x128xf32> to vector<1x24x128xf32>
    tpu.vector_store %arg5[%c0_13, %c0_14, %c0_15], %42 {strides = array<i32>} : memref<1x24x128xf32, #tpu.memory_space<vmem>>, vector<1x24x128xf32>,
    return
  }
  func.func @transform_0(%arg0: i32, %arg1: i32) -> (i32, i32) {
    %c0_i32 = arith.constant 0 : i32
    %c0_i32_0 = arith.constant 0 : i32
    return %arg0, %c0_i32 : i32, i32
  }
  func.func @transform_1(%arg0: i32, %arg1: i32) -> (i32, i32) {
    %c0_i32 = arith.constant 0 : i32
    %c0_i32_0 = arith.constant 0 : i32
    return %arg0, %c0_i32 : i32, i32
  }
  func.func @transform_2(%arg0: i32, %arg1: i32) -> (i32, i32, i32) {
    %c0_i32 = arith.constant 0 : i32
    %c0_i32_0 = arith.constant 0 : i32
    %c0_i32_1 = arith.constant 0 : i32
    return %arg1, %c0_i32, %c0_i32_0 : i32, i32, i32
  }
  func.func @transform_3(%arg0: i32, %arg1: i32) -> (i32, i32, i32) {
    %c0_i32 = arith.constant 0 : i32
    %c0_i32_0 = arith.constant 0 : i32
    %c0_i32_1 = arith.constant 0 : i32
    return %arg0, %c0_i32, %c0_i32_0 : i32, i32, i32
  }
}

</mosaic_0001>

<llo_original>
// kernel: tpu_custom_call.1
$region0: #{tpu_custom_call.1}
  #allocation0 [shape = 'u32[]', space=smem, size = 0x4, offset = 0x4, fixed_abs, tag = 'smem constant byte address 0x4 - core index']
  #allocation1 [shape = 'u32[144,128]{1,0:T(1,128)}', space=vmem, size = 0x12000, scoped, tag = 'internal scratch']
  %s0 = inlined_call_operand.vmem [shape: bf16[80,64], index: 0, kind: input, shape index: {}]
  %s1 = inlined_call_operand.vmem [shape: bf16[80,64], index: 1, kind: input, shape index: {}]
  %s2 = inlined_call_operand.vmem [shape: bf16[1,64,256], index: 2, kind: input, shape index: {}]
  %s3 = inlined_call_operand.hbm [shape: f32[2,24,128], index: 3, kind: output, shape index: {}]
  %s4 = sld [smem:[#allocation0]]
  $region45: #{tpu_custom_call.1} parent=0
    _
  %s6 = ssub.s32 1, %s4
  %s7 = scalar_select 0, %s6, %s4
  $region1: #{tpu_custom_call.1} parent=0
    #allocation2 [shape = 'u8[24576]{0}', space=vmem, size = 0x6000, scoped, tag = 'output window, operand 0']
    #allocation3 [shape = 's32[2]{0}', space=sflag, size = 0x8, scoped, tag = 'scoped memory for tpu_custom_call.1']
    %8 = vsyncpa [#allocation3], 0
    %s9 = scalar_lea.sflag [#allocation3], 1
    %10 = vsyncpa %s9, 0
    loop: start=0, step=1, limit=4
    $region2: #{tpu_custom_call.1} parent=1 // loop_pre_header
      _
    $region3: #{tpu_custom_call.1} parent=1 // loop_header
      %s12 = sphi 0, %s16
      %p13 = scmp.ge.s32.totalorder %s12, 4
      %s19 = sphi 0, %s31
      %s20 = sphi 0, %s27
      %s21 = sphi 0, %s19
      %s22 = sphi 0, %s20
      %s23 = sphi 0, %s21
      %s24 = sphi 0, %s22
      %s34 = sphi 0, %s36
      %s37 = sphi 0, %s34
      %s38 = sphi 0, %s37
      %s54 = sphi 0, %s38
      %s60 = sphi 0, %s62
      %s63 = sphi 0, %s60
      %s64 = sphi 0, %s63
      %s80 = sphi 0, %s64
      %s86 = sphi 0, %s88
      %s89 = sphi 0, %s86
      %s90 = sphi 0, %s89
      %s106 = sphi 0, %s90
      %s112 = sphi 0, %s114
      %s115 = sphi 0, %s112
      %s116 = sphi 0, %s115
      %s132 = sphi 0, %s116
    $region4: #{tpu_custom_call.1} parent=1 // loop_header_branch
      %15 = sbr.rel (%p13) target = $region8
    $region5: #{tpu_custom_call.1} parent=1 // loop_body
      %s17 = ssub.s32 %s12, 1
      %s18 = ssub.s32 %s12, 2
      %s25 = sadd.s32 1, %s20
      %p26 = scmp.ge.s32.totalorder %s25, 1
      %s27 = scalar_select %p26, 0, %s25
      %s28 = sadd.s32 1, %s19
      %s29 = scalar_select %p26, %s28, %s19
      %p30 = scmp.ge.s32.totalorder %s29, 2
      %s31 = scalar_select %p30, 0, %s29
      %s32 = ssub.s32 %s19, %s31
      %p33 = scmp.eq.s32.totalorder %s32, 0
      %s35 = sadd.s32 %s34, 1
      %s36 = scalar_select %p33, %s34, %s35
      %p39 = pneg %p33
      %p40 = scmp.eq.s32.totalorder %s12, 1
      %p41 = por %p39, %p40
      %p42 = scmp.ne.s32.totalorder %s34, %s37
      %p43 = scmp.eq.s32.totalorder %s12, 0
      %p44 = por %p42, %p43
      %p45 = scmp.ne.s32.totalorder %s34, %s37
      %p46 = scmp.eq.s32.totalorder %s17, 1
      %p47 = por %p45, %p46
      %p48 = scmp.ne.s32.totalorder %s37, %s38
      %p49 = scmp.eq.s32.totalorder %s17, 0
      %p50 = por %p48, %p49
      %p51 = scmp.ne.s32.totalorder %s37, %s38
      %p52 = scmp.eq.s32.totalorder %s18, 1
      %p53 = por %p51, %p52
      %p55 = scmp.ne.s32.totalorder %s38, %s54
      %p56 = scmp.eq.s32.totalorder %s18, 0
      %p57 = por %p55, %p56
      %s58 = ssub.s32 %s19, %s31
      %p59 = scmp.eq.s32.totalorder %s58, 0
      %s61 = sadd.s32 %s60, 1
      %s62 = scalar_select %p59, %s60, %s61
      %p65 = pneg %p59
      %p66 = scmp.eq.s32.totalorder %s12, 1
      %p67 = por %p65, %p66
      %p68 = scmp.ne.s32.totalorder %s60, %s63
      %p69 = scmp.eq.s32.totalorder %s12, 0
      %p70 = por %p68, %p69
      %p71 = scmp.ne.s32.totalorder %s60, %s63
      %p72 = scmp.eq.s32.totalorder %s17, 1
      %p73 = por %p71, %p72
      %p74 = scmp.ne.s32.totalorder %s63, %s64
      %p75 = scmp.eq.s32.totalorder %s17, 0
      %p76 = por %p74, %p75
      %p77 = scmp.ne.s32.totalorder %s63, %s64
      %p78 = scmp.eq.s32.totalorder %s18, 1
      %p79 = por %p77, %p78
      %p81 = scmp.ne.s32.totalorder %s64, %s80
      %p82 = scmp.eq.s32.totalorder %s18, 0
      %p83 = por %p81, %p82
      %s84 = ssub.s32 %s20, %s27
      %p85 = scmp.eq.s32.totalorder %s84, 0
      %s87 = sadd.s32 %s86, 1
      %s88 = scalar_select %p85, %s86, %s87
      %p91 = pneg %p85
      %p92 = scmp.eq.s32.totalorder %s12, 1
      %p93 = por %p91, %p92
      %p94 = scmp.ne.s32.totalorder %s86, %s89
      %p95 = scmp.eq.s32.totalorder %s12, 0
      %p96 = por %p94, %p95
      %p97 = scmp.ne.s32.totalorder %s86, %s89
      %p98 = scmp.eq.s32.totalorder %s17, 1
      %p99 = por %p97, %p98
      %p100 = scmp.ne.s32.totalorder %s89, %s90
      %p101 = scmp.eq.s32.totalorder %s17, 0
      %p102 = por %p100, %p101
      %p103 = scmp.ne.s32.totalorder %s89, %s90
      %p104 = scmp.eq.s32.totalorder %s18, 1
      %p105 = por %p103, %p104
      %p107 = scmp.ne.s32.totalorder %s90, %s106
      %p108 = scmp.eq.s32.totalorder %s18, 0
      %p109 = por %p107, %p108
      %s110 = ssub.s32 %s19, %s31
      %p111 = scmp.eq.s32.totalorder %s110, 0
      %s113 = sadd.s32 %s112, 1
      %s114 = scalar_select %p111, %s112, %s113
      %p117 = pneg %p111
      %p118 = scmp.eq.s32.totalorder %s12, 1
      %p119 = por %p117, %p118
      %p120 = scmp.ne.s32.totalorder %s112, %s115
      %p121 = scmp.eq.s32.totalorder %s12, 0
      %p122 = por %p120, %p121
      %p123 = scmp.ne.s32.totalorder %s112, %s115
      %p124 = scmp.eq.s32.totalorder %s17, 1
      %p125 = por %p123, %p124
      %p126 = scmp.ne.s32.totalorder %s115, %s116
      %p127 = scmp.eq.s32.totalorder %s17, 0
      %p128 = por %p126, %p127
      %p129 = scmp.ne.s32.totalorder %s115, %s116
      %p130 = scmp.eq.s32.totalorder %s18, 1
      %p131 = por %p129, %p130
      %p133 = scmp.ne.s32.totalorder %s116, %s132
      %p134 = scmp.eq.s32.totalorder %s18, 0
      %p135 = por %p133, %p134
      %p136 = scmp.le.s32.totalorder 1, %s12
      %p137 = scmp.lt.s32.totalorder %s12, 3
      %p138 = pnand %p136, %p137
      %p139 = pneg %p138
      // Predicated region
      $region9: #{tpu_custom_call.1} parent=5 // pred_check
        _
      $region10: #{tpu_custom_call.1} parent=5 // pred_check_branch
        %141 = sbr.rel (%p138) target = $region12
      $region11: #{tpu_custom_call.1} parent=5 // pred_region
        %s142 = ssub.s32 %s12, 1
        // Predicated region
        $region13: #{tpu_custom_call.1} parent=11 // pred_check
          %p143 = pneg %p102
        $region14: #{tpu_custom_call.1} parent=11 // pred_check_branch
          %145 = sbr.rel (%p143) target = $region16
        $region15: #{tpu_custom_call.1} parent=11 // pred_region
          %p146 = scmp.lt.s32.totalorder %s22, 0
          %s147 = scalar_select %p146, %s22, 0
          %s148 = smul.addr %s147, 16
          %s149 = smul.addr %s148, 4
          %s150 = scalar_lea.vmem %s2, %s149
        $region16: #{tpu_custom_call.1} parent=11 // pred_fallthru
          _
      $region12: #{tpu_custom_call.1} parent=5 // pred_fallthru
        _
      %p151 = scmp.lt.s32.totalorder %s12, 2
      // Predicated region
      $region17: #{tpu_custom_call.1} parent=5 // pred_check
        %p152 = pneg %p151
      $region18: #{tpu_custom_call.1} parent=5 // pred_check_branch
        %154 = sbr.rel (%p152) target = $region20
      $region19: #{tpu_custom_call.1} parent=5 // pred_region
        // Predicated region
        $region21: #{tpu_custom_call.1} parent=19 // pred_check
          %p155 = pneg %p44
        $region22: #{tpu_custom_call.1} parent=19 // pred_check_branch
          %157 = sbr.rel (%p155) target = $region24
        $region23: #{tpu_custom_call.1} parent=19 // pred_region
          %s158 = smul.u32 5, %s19
          %p159 = scmp.lt.s32.totalorder %s158, 9
          %s160 = scalar_select %p159, %s158, 9
          %s161 = smul.addr %s160, 4
          %s162 = scalar_lea.vmem %s0, %s161
          %s163 = smul.u32 5, %s19
        $region24: #{tpu_custom_call.1} parent=19 // pred_fallthru
          _
        // Predicated region
        $region25: #{tpu_custom_call.1} parent=19 // pred_check
          %p164 = pneg %p70
        $region26: #{tpu_custom_call.1} parent=19 // pred_check_branch
          %166 = sbr.rel (%p164) target = $region28
        $region27: #{tpu_custom_call.1} parent=19 // pred_region
          %s167 = smul.u32 5, %s19
          %p168 = scmp.lt.s32.totalorder %s167, 9
          %s169 = scalar_select %p168, %s167, 9
          %s170 = smul.addr %s169, 4
          %s171 = scalar_lea.vmem %s1, %s170
          %s172 = smul.u32 5, %s19
        $region28: #{tpu_custom_call.1} parent=19 // pred_fallthru
          _
      $region20: #{tpu_custom_call.1} parent=5 // pred_fallthru
        _
      %p173 = scmp.le.s32.totalorder 1, %s12
      %p174 = scmp.lt.s32.totalorder %s12, 3
      %p175 = pnand %p173, %p174
      %p176 = pneg %p175
      // Predicated region
      $region29: #{tpu_custom_call.1} parent=5 // pred_check
        _
      $region30: #{tpu_custom_call.1} parent=5 // pred_check_branch
        %178 = sbr.rel (%p175) target = $region32
      $region31: #{tpu_custom_call.1} parent=5 // pred_region
        %s179 = ssub.s32 %s12, 1
        %s180 = smul.u32 5, %s21
        %p181 = scmp.lt.s32.totalorder %s180, 9
        %s182 = scalar_select %p181, %s180, 9
        %s183 = smul.addr %s182, 4
        %s184 = scalar_lea.vmem %s0, %s183
        %p185 = pneg %p50
        %p186 = pneg %p47
        %s187 = smul.u32 5, %s21
        %p188 = scmp.lt.s32.totalorder %s187, 9
        %s189 = scalar_select %p188, %s187, 9
        %s190 = smul.addr %s189, 4
        %s191 = scalar_lea.vmem %s1, %s190
        %p192 = pneg %p76
        %p193 = pneg %p73
        %p194 = scmp.lt.s32.totalorder %s22, 0
        %s195 = scalar_select %p194, %s22, 0
        %s196 = smul.addr %s195, 16
        %s197 = smul.addr %s196, 4
        %s198 = scalar_lea.vmem %s2, %s197
        %p199 = pneg %p102
        %p200 = pneg %p99
        %p201 = pneg %p128
        %p202 = pneg %p125
        %s203 = sand.u32 %s115, 1
        %s204 = scalar_lea.sflag [#allocation3], %s203
        %s205 = sand.u32 %s115, 1
        %s206 = smul.addr %s205, 24
        %s207 = scalar_lea.vmem [#allocation2], %s206
        %s208 = smul.u32 5, %s21
        %p209 = scmp.lt.s32.totalorder %s208, 9
        %s210 = scalar_select %p209, %s208, 9
        %s211 = smul.addr %s210, 4
        %s212 = scalar_lea.vmem %s0, %s211
        %s213 = smul.u32 5, %s21
        %s214 = smul.u32 5, %s21
        %p215 = scmp.lt.s32.totalorder %s214, 9
        %s216 = scalar_select %p215, %s214, 9
        %s217 = smul.addr %s216, 4
        %s218 = scalar_lea.vmem %s1, %s217
        %s219 = smul.u32 5, %s21
        %p220 = scmp.lt.s32.totalorder %s22, 0
        %s221 = scalar_select %p220, %s22, 0
        %s222 = smul.addr %s221, 16
        %s223 = smul.addr %s222, 4
        %s224 = scalar_lea.vmem %s2, %s223
        %v226 = vld [vmem:[%s224] sm:$0xff]
        %v227 = vld [vmem:[%s224 + $0x8] sm:$0xff]
        %v228 = vld [vmem:[%s224 + $0x10] sm:$0xff]
        %v229 = vld [vmem:[%s224 + $0x18] sm:$0xff]
        %v230 = vld [vmem:[%s224 + $0x20] sm:$0xff]
        %v231 = vld [vmem:[%s224 + $0x28] sm:$0xff]
        %v232 = vld [vmem:[%s224 + $0x30] sm:$0xff]
        %v233 = vld [vmem:[%s224 + $0x38] sm:$0xff]
        %v234 = vld [vmem:[%s212] sm:$0xf]
        %v235 = vld [vmem:[%s212 + $0x4] sm:$0xf]
        %v236 = vld [vmem:[%s212 + $0x8] sm:$0xf]
        %v237 = vld [vmem:[%s212 + $0xc] sm:$0xf]
        %v238 = vld [vmem:[%s212 + $0x10] sm:$0xf]
        %v244 = vunpack.c.l.b16 %v234
        %v245 = vunpack.c.l.b16 %v235
        %v246 = vunpack.c.l.b16 %v236
        %v247 = vunpack.c.l.b16 %v237
        %v248 = vunpack.c.l.b16 %v238
        %v249 = vpack.c.b16 %v245, %v244
        %v250 = vpack.c.b16 %v247, %v246
        %v251 = vpack.c.b16 %v248, %v248
        %v260 = vunpack.c.l.b16 %v226
        %v261 = vunpack.c.h.b16 %v226
        %v262 = vunpack.c.l.b16 %v227
        %v263 = vunpack.c.h.b16 %v227
        %v264 = vunpack.c.l.b16 %v228
        %v265 = vunpack.c.h.b16 %v228
        %v266 = vunpack.c.l.b16 %v229
        %v267 = vunpack.c.h.b16 %v229
        %v268 = vunpack.c.l.b16 %v230
        %v269 = vunpack.c.h.b16 %v230
        %v270 = vunpack.c.l.b16 %v231
        %v271 = vunpack.c.h.b16 %v231
        %v272 = vunpack.c.l.b16 %v232
        %v273 = vunpack.c.h.b16 %v232
        %v274 = vunpack.c.l.b16 %v233
        %v275 = vunpack.c.h.b16 %v233
        %v276 = vpack.c.b16 %v262, %v260
        %v277 = vpack.c.b16 %v263, %v261
        %v278 = vpack.c.b16 %v266, %v264
        %v279 = vpack.c.b16 %v267, %v265
        %v280 = vpack.c.b16 %v270, %v268
        %v281 = vpack.c.b16 %v271, %v269
        %v282 = vpack.c.b16 %v274, %v272
        %v283 = vpack.c.b16 %v275, %v273
        %vm292 = vcmask 523264
        %v294 = vsel %vm292, %v249, 0
        %v297 = vsel %vm292, %v250, 0
        %v300 = vsel %vm292, %v251, 0
        %302 = vmatprep.subr.bf16.mxu0 %v277
        %303 = vmatpush1.bf16.msra.mxu0 %v276
        %304 = vmatprep.subr.bf16.mxu0 %v279
        %305 = vmatpush1.bf16.msra.mxu0 %v278
        %306 = vmatprep.subr.bf16.mxu0 %v281
        %307 = vmatpush1.bf16.msra.mxu0 %v280
        %308 = vmatprep.subr.bf16.mxu0 %v283
        %309 = vmatpush1.bf16.msra.mxu0 %v282
        %310 = vmatprep.subr.bf16.mxu0 0
        %311 = vmatpush1.bf16.msra.mxu0 0
        %312 = vmatprep.subr.bf16.mxu0 0
        %313 = vmatpush1.bf16.msra.mxu0 0
        %314 = vmatprep.subr.bf16.mxu0 0
        %315 = vmatpush1.bf16.msra.mxu0 0
        %316 = vmatprep.subr.bf16.mxu0 0
        %317 = vmatpush1.bf16.msra.mxu0 0
        %318 = vmatprep.subr.bf16.mxu0 0
        %319 = vmatpush1.bf16.msra.mxu0 0
        %320 = vmatprep.subr.bf16.mxu0 0
        %321 = vmatpush1.bf16.msra.mxu0 0
        %322 = vmatprep.subr.bf16.mxu0 0
        %323 = vmatpush1.bf16.msra.mxu0 0
        %324 = vmatprep.subr.bf16.mxu0 0
        %325 = vmatpush1.bf16.msra.mxu0 0
        %326 = vmatprep.subr.bf16.mxu0 0
        %327 = vmatpush1.bf16.msra.mxu0 0
        %328 = vmatprep.subr.bf16.mxu0 0
        %329 = vmatpush1.bf16.msra.mxu0 0
        %330 = vmatprep.subr.bf16.mxu0 0
        %331 = vmatpush1.bf16.msra.mxu0 0
        %332 = vmatprep.subr.bf16.mxu0 0
        %333 = vmatpush1.bf16.msra.mxu0 0
        %334 = vmatprep.mubr.bf16.mxu0 0
        %335 = vmatmul.mubr.bf16.gmra.mrb[0].mxu0 %v294
        %v336 = vpop.f32.mrb[0].mxu0
        %v337 = vadd.f32 0.0, %v336
        %v338 = vpop.f32.mrb[0].mxu0
        %v339 = vadd.f32 0.0, %v338
        %v340 = vpop.f32.mrb[0].mxu0
        %v341 = vadd.f32 0.0, %v340
        %v342 = vpop.f32.mrb[0].mxu0
        %v343 = vadd.f32 0.0, %v342
        %344 = vmatprep.mubr.bf16.mxu0 0
        %345 = vmatmul.mubr.bf16.gmra.mrb[0].mxu0 %v297
        %v346 = vpop.f32.mrb[0].mxu0
        %v347 = vadd.f32 0.0, %v346
        %v348 = vpop.f32.mrb[0].mxu0
        %v349 = vadd.f32 0.0, %v348
        %v350 = vpop.f32.mrb[0].mxu0
        %v351 = vadd.f32 0.0, %v350
        %v352 = vpop.f32.mrb[0].mxu0
        %v353 = vadd.f32 0.0, %v352
        %354 = vmatprep.mubr.bf16.mxu0 0
        %355 = vmatmul.mubr.bf16.gmra.mrb[0].mxu0 %v300
        %v356 = vpop.f32.mrb[0].mxu0
        %v357 = vadd.f32 0.0, %v356
        %v358 = vpop.f32.mrb[0].mxu0
        %v359 = vadd.f32 0.0, %v358
        %v360 = vpop.f32.mrb[0].mxu0
        %v361 = vpop.f32.mrb[0].mxu0
        %362 = vdwg.mxu0
        %v363 = vld [vmem:[%s218] sm:$0xf]
        %v364 = vld [vmem:[%s218 + $0x4] sm:$0xf]
        %v365 = vld [vmem:[%s218 + $0x8] sm:$0xf]
        %v366 = vld [vmem:[%s218 + $0xc] sm:$0xf]
        %v367 = vld [vmem:[%s218 + $0x10] sm:$0xf]
        %v373 = vunpack.c.l.b16 %v363
        %v374 = vunpack.c.l.b16 %v364
        %v375 = vunpack.c.l.b16 %v365
        %v376 = vunpack.c.l.b16 %v366
        %v377 = vunpack.c.l.b16 %v367
        %v378 = vpack.c.b16 %v374, %v373
        %v379 = vpack.c.b16 %v376, %v375
        %v380 = vpack.c.b16 %v377, %v377
        %v382 = vsel %vm292, %v378, 0
        %v385 = vsel %vm292, %v379, 0
        %v388 = vsel %vm292, %v380, 0
        %390 = vmatprep.subr.bf16.mxu0 %v277
        %391 = vmatpush1.bf16.msra.mxu0 %v276
        %392 = vmatprep.subr.bf16.mxu0 %v279
        %393 = vmatpush1.bf16.msra.mxu0 %v278
        %394 = vmatprep.subr.bf16.mxu0 %v281
        %395 = vmatpush1.bf16.msra.mxu0 %v280
        %396 = vmatprep.subr.bf16.mxu0 %v283
        %397 = vmatpush1.bf16.msra.mxu0 %v282
        %398 = vmatprep.subr.bf16.mxu0 0
        %399 = vmatpush1.bf16.msra.mxu0 0
        %400 = vmatprep.subr.bf16.mxu0 0
        %401 = vmatpush1.bf16.msra.mxu0 0
        %402 = vmatprep.subr.bf16.mxu0 0
        %403 = vmatpush1.bf16.msra.mxu0 0
        %404 = vmatprep.subr.bf16.mxu0 0
        %405 = vmatpush1.bf16.msra.mxu0 0
        %406 = vmatprep.subr.bf16.mxu0 0
        %407 = vmatpush1.bf16.msra.mxu0 0
        %408 = vmatprep.subr.bf16.mxu0 0
        %409 = vmatpush1.bf16.msra.mxu0 0
        %410 = vmatprep.subr.bf16.mxu0 0
        %411 = vmatpush1.bf16.msra.mxu0 0
        %412 = vmatprep.subr.bf16.mxu0 0
        %413 = vmatpush1.bf16.msra.mxu0 0
        %414 = vmatprep.subr.bf16.mxu0 0
        %415 = vmatpush1.bf16.msra.mxu0 0
        %416 = vmatprep.subr.bf16.mxu0 0
        %417 = vmatpush1.bf16.msra.mxu0 0
        %418 = vmatprep.subr.bf16.mxu0 0
        %419 = vmatpush1.bf16.msra.mxu0 0
        %420 = vmatprep.subr.bf16.mxu0 0
        %421 = vmatpush1.bf16.msra.mxu0 0
        %422 = vmatprep.mubr.bf16.mxu0 0
        %423 = vmatmul.mubr.bf16.gmra.mrb[0].mxu0 %v382
        %v424 = vpop.f32.mrb[0].mxu0
        %v425 = vadd.f32 0.0, %v424
        %v426 = vpop.f32.mrb[0].mxu0
        %v427 = vadd.f32 0.0, %v426
        %v428 = vpop.f32.mrb[0].mxu0
        %v429 = vadd.f32 0.0, %v428
        %v430 = vpop.f32.mrb[0].mxu0
        %v431 = vadd.f32 0.0, %v430
        %432 = vmatprep.mubr.bf16.mxu0 0
        %433 = vmatmul.mubr.bf16.gmra.mrb[0].mxu0 %v385
        %v434 = vpop.f32.mrb[0].mxu0
        %v435 = vadd.f32 0.0, %v434
        %v436 = vpop.f32.mrb[0].mxu0
        %v437 = vadd.f32 0.0, %v436
        %v438 = vpop.f32.mrb[0].mxu0
        %v439 = vadd.f32 0.0, %v438
        %v440 = vpop.f32.mrb[0].mxu0
        %v441 = vadd.f32 0.0, %v440
        %442 = vmatprep.mubr.bf16.mxu0 0
        %443 = vmatmul.mubr.bf16.gmra.mrb[0].mxu0 %v388
        %v444 = vpop.f32.mrb[0].mxu0
        %v445 = vadd.f32 0.0, %v444
        %v446 = vpop.f32.mrb[0].mxu0
        %v447 = vadd.f32 0.0, %v446
        %v448 = vpop.f32.mrb[0].mxu0
        %v449 = vpop.f32.mrb[0].mxu0
        %450 = vdwg.mxu0
        %v451 = vmul.f32 %v337, %v337
        %v452 = vmul.f32 %v341, %v341
        %v453 = vmul.f32 %v347, %v347
        %v454 = vmul.f32 %v351, %v351
        %v455 = vmul.f32 %v357, %v357
        %v456 = vmul.f32 %v339, %v339
        %v457 = vmul.f32 %v343, %v343
        %v458 = vmul.f32 %v349, %v349
        %v459 = vmul.f32 %v353, %v353
        %v460 = vmul.f32 %v359, %v359
        %v461 = vadd.f32 %v451, %v456
        %v462 = vadd.f32 %v452, %v457
        %v463 = vadd.f32 %v453, %v458
        %v464 = vadd.f32 %v454, %v459
        %v465 = vadd.f32 %v455, %v460
        %v466 = vmax.f32 %v461, 1e-07
        %v467 = vmax.f32 %v462, 1e-07
        %v468 = vmax.f32 %v463, 1e-07
        %v469 = vmax.f32 %v464, 1e-07
        %v470 = vmax.f32 %v465, 1e-07
        %v471 = vmul.f32 %v425, %v425
        %v472 = vmul.f32 %v429, %v429
        %v473 = vmul.f32 %v435, %v435
        %v474 = vmul.f32 %v439, %v439
        %v475 = vmul.f32 %v445, %v445
        %v476 = vmul.f32 %v427, %v427
        %v477 = vmul.f32 %v431, %v431
        %v478 = vmul.f32 %v437, %v437
        %v479 = vmul.f32 %v441, %v441
        %v480 = vmul.f32 %v447, %v447
        %v481 = vadd.f32 %v471, %v476
        %v482 = vadd.f32 %v472, %v477
        %v483 = vadd.f32 %v473, %v478
        %v484 = vadd.f32 %v474, %v479
        %v485 = vadd.f32 %v475, %v480
        %v486 = vmax.f32 %v481, 1e-07
        %v487 = vmax.f32 %v482, 1e-07
        %v488 = vmax.f32 %v483, 1e-07
        %v489 = vmax.f32 %v484, 1e-07
        %v490 = vmax.f32 %v485, 1e-07
        %v491 = vrsqrt.pop %v486
        %v492 = vmul.f32 %v486, %v491
        %vm493 = vcmp.eq.f32.partialorder %v486, inf
        %v494 = vsel %vm493, %v486, %v492
        %vm495 = vcmp.eq.f32.partialorder %v486, 0.0
        %v496 = vand.u32 %v486, 2147483648
        %v497 = vsel %vm495, %v496, %v494
        %v498 = vrsqrt.pop %v487
        %v499 = vmul.f32 %v487, %v498
        %vm500 = vcmp.eq.f32.partialorder %v487, inf
        %v501 = vsel %vm500, %v487, %v499
        %vm502 = vcmp.eq.f32.partialorder %v487, 0.0
        %v503 = vand.u32 %v487, 2147483648
        %v504 = vsel %vm502, %v503, %v501
        %v505 = vrsqrt.pop %v488
        %v506 = vmul.f32 %v488, %v505
        %vm507 = vcmp.eq.f32.partialorder %v488, inf
        %v508 = vsel %vm507, %v488, %v506
        %vm509 = vcmp.eq.f32.partialorder %v488, 0.0
        %v510 = vand.u32 %v488, 2147483648
        %v511 = vsel %vm509, %v510, %v508
        %v512 = vrsqrt.pop %v489
        %v513 = vmul.f32 %v489, %v512
        %vm514 = vcmp.eq.f32.partialorder %v489, inf
        %v515 = vsel %vm514, %v489, %v513
        %vm516 = vcmp.eq.f32.partialorder %v489, 0.0
        %v517 = vand.u32 %v489, 2147483648
        %v518 = vsel %vm516, %v517, %v515
        %v519 = vrsqrt.pop %v490
        %v520 = vmul.f32 %v490, %v519
        %vm521 = vcmp.eq.f32.partialorder %v490, inf
        %v522 = vsel %vm521, %v490, %v520
        %vm523 = vcmp.eq.f32.partialorder %v490, 0.0
        %v524 = vand.u32 %v490, 2147483648
        %v525 = vsel %vm523, %v524, %v522
        %v526 = vrsqrt.pop %v466
        %v527 = vmul.f32 %v466, %v526
        %vm528 = vcmp.eq.f32.partialorder %v466, inf
        %v529 = vsel %vm528, %v466, %v527
        %vm530 = vcmp.eq.f32.partialorder %v466, 0.0
        %v531 = vand.u32 %v466, 2147483648
        %v532 = vsel %vm530, %v531, %v529
        %v533 = vrsqrt.pop %v467
        %v534 = vmul.f32 %v467, %v533
        %vm535 = vcmp.eq.f32.partialorder %v467, inf
        %v536 = vsel %vm535, %v467, %v534
        %vm537 = vcmp.eq.f32.partialorder %v467, 0.0
        %v538 = vand.u32 %v467, 2147483648
        %v539 = vsel %vm537, %v538, %v536
        %v540 = vrsqrt.pop %v468
        %v541 = vmul.f32 %v468, %v540
        %vm542 = vcmp.eq.f32.partialorder %v468, inf
        %v543 = vsel %vm542, %v468, %v541
        %vm544 = vcmp.eq.f32.partialorder %v468, 0.0
        %v545 = vand.u32 %v468, 2147483648
        %v546 = vsel %vm544, %v545, %v543
        %v547 = vrsqrt.pop %v469
        %v548 = vmul.f32 %v469, %v547
        %vm549 = vcmp.eq.f32.partialorder %v469, inf
        %v550 = vsel %vm549, %v469, %v548
        %vm551 = vcmp.eq.f32.partialorder %v469, 0.0
        %v552 = vand.u32 %v469, 2147483648
        %v553 = vsel %vm551, %v552, %v550
        %v554 = vrsqrt.pop %v470
        %v555 = vmul.f32 %v470, %v554
        %vm556 = vcmp.eq.f32.partialorder %v470, inf
        %v557 = vsel %vm556, %v470, %v555
        %vm558 = vcmp.eq.f32.partialorder %v470, 0.0
        %v559 = vand.u32 %v470, 2147483648
        %v560 = vsel %vm558, %v559, %v557
        %v561 = vsub.f32 %v497, %v532
        %v562 = vsub.f32 %v504, %v539
        %v563 = vsub.f32 %v511, %v546
        %v564 = vsub.f32 %v518, %v553
        %v565 = vsub.f32 %v525, %v560
        %v566 = vmul.f32 %v561, %v561
        %v567 = vmul.f32 %v562, %v562
        %v568 = vmul.f32 %v563, %v563
        %v569 = vmul.f32 %v564, %v564
        %v570 = vmul.f32 %v565, %v565
        %v571 = vrcp.pop %v466
        %v572 = vmul.f32 %v486, %v571
        %v573 = vrcp.pop %v467
        %v574 = vmul.f32 %v487, %v573
        %v575 = vrcp.pop %v468
        %v576 = vmul.f32 %v488, %v575
        %v577 = vrcp.pop %v469
        %v578 = vmul.f32 %v489, %v577
        %v579 = vrcp.pop %v470
        %v580 = vmul.f32 %v490, %v579
        %v581 = vlog2.pop %v572
        %v582 = vmul.f32 %v581, 0.6931472
        %v583 = vlog2.pop %v574
        %v584 = vmul.f32 %v583, 0.6931472
        %v585 = vlog2.pop %v576
        %v586 = vmul.f32 %v585, 0.6931472
        %v587 = vlog2.pop %v578
        %v588 = vmul.f32 %v587, 0.6931472
        %v589 = vlog2.pop %v580
        %v590 = vmul.f32 %v589, 0.6931472
        %v591 = vand.u32 2147483647, %v582
        %v592 = vand.u32 2147483647, %v584
        %v593 = vand.u32 2147483647, %v586
        %v594 = vand.u32 2147483647, %v588
        %v595 = vand.u32 2147483647, %v590
        %v596 = vmul.f32 %v591, 0.5
        %v597 = vmul.f32 %v592, 0.5
        %v598 = vmul.f32 %v593, 0.5
        %v599 = vmul.f32 %v594, 0.5
        %v600 = vmul.f32 %v595, 0.5
        %v601 = vadd.f32 %v566, %v567
        %v602 = vadd.f32 %v601, %v568
        %v603 = vadd.f32 %v602, %v569
        %v604 = vadd.f32 %v603, %v570
        %v605 = vadd.f32 %v486, %v487
        %v606 = vadd.f32 %v605, %v488
        %v607 = vadd.f32 %v606, %v489
        %v608 = vadd.f32 %v607, %v490
        %v609 = vadd.f32 %v596, %v597
        %v610 = vadd.f32 %v609, %v598
        %v611 = vadd.f32 %v610, %v599
        %v612 = vadd.f32 %v611, %v600
        %613 = vst [vmem:[%s207] sm:$0xff] %v604
        %614 = vst [vmem:[%s207 + $0x8] sm:$0xff] %v608
        %615 = vst [vmem:[%s207 + $0x10] sm:$0xff] %v612
        %s616 = sand.u32 %s115, 1
        %s617 = scalar_lea.sflag [#allocation3], %s616
        %s618 = sand.u32 %s115, 1
        %s619 = smul.addr %s618, 24
        %s620 = scalar_lea.vmem [#allocation2], %s619
        // Predicated region
        $region33: #{tpu_custom_call.1} parent=31 // pred_check
          %p621 = pneg %p125
        $region34: #{tpu_custom_call.1} parent=31 // pred_check_branch
          %623 = sbr.rel (%p621) target = $region36
        $region35: #{tpu_custom_call.1} parent=31 // pred_region
          %s625 = ssub.s32 384, 384
          %626 = vsyncadd %s617, %s625
          %s627 = smul.addr %s21, 3
          %s628 = smul.addr %s627, 128
          %s629 = scalar_lea.hbm %s3, %s628
          %s630 = sshll.u32 %s620, 4
          %s631 = int_to_ptr.vmem [resolvable:$true] %s630
          %636 = dma.vmem_to_hbm [thread:$0]  %s631, 384, %s629, %s617, 128, 128, 8
        $region36: #{tpu_custom_call.1} parent=31 // pred_fallthru
          _
      $region32: #{tpu_custom_call.1} parent=5 // pred_fallthru
        _
      %p637 = scmp.le.s32.totalorder 2, %s12
      // Predicated region
      $region37: #{tpu_custom_call.1} parent=5 // pred_check
        %p638 = pneg %p637
      $region38: #{tpu_custom_call.1} parent=5 // pred_check_branch
        %640 = sbr.rel (%p638) target = $region40
      $region39: #{tpu_custom_call.1} parent=5 // pred_region
        %s641 = ssub.s32 %s12, 2
        // Predicated region
        $region41: #{tpu_custom_call.1} parent=39 // pred_check
          %p642 = pneg %p131
        $region42: #{tpu_custom_call.1} parent=39 // pred_check_branch
          %644 = sbr.rel (%p642) target = $region44
        $region43: #{tpu_custom_call.1} parent=39 // pred_region
          %s645 = sand.u32 %s116, 1
          %s646 = scalar_lea.sflag [#allocation3], %s645
          %s647 = sand.u32 %s116, 1
          %s648 = smul.addr %s647, 24
          %s649 = scalar_lea.vmem [#allocation2], %s648
          %650 = dma.done %s646, 384
        $region44: #{tpu_custom_call.1} parent=39 // pred_fallthru
          _
      $region40: #{tpu_custom_call.1} parent=5 // pred_fallthru
        _
    $region6: #{tpu_custom_call.1} parent=1 // loop_footer
      %s16 = sadd.s32 1, %s12
    $region7: #{tpu_custom_call.1} parent=1 // loop_footer_branch
      %11 = sbr.rel target = $region3
    $region8: #{tpu_custom_call.1} parent=1 // loop_exit
      _
    %651 = vsyncpa [#allocation3], 1
    %s652 = scalar_lea.sflag [#allocation3], 1
    %653 = vsyncpa %s652, 1

// kernel: tpu_custom_call.1
$region0: #{tpu_custom_call.1}
  #allocation0 [shape = 'u32[]', space=smem, size = 0x4, offset = 0x4, fixed_abs, tag = 'smem constant byte address 0x4 - core index']
  #allocation1 [shape = 'u32[144,128]{1,0:T(1,128)}', space=vmem, size = 0x12000, scoped, tag = 'internal scratch']
  %s0 = inlined_call_operand.vmem [shape: bf16[80,64], index: 0, kind: input, shape index: {}]
  %s1 = inlined_call_operand.vmem [shape: bf16[80,64], index: 1, kind: input, shape index: {}]
  %s2 = inlined_call_operand.vmem [shape: bf16[1,64,256], index: 2, kind: input, shape index: {}]
  %s3 = inlined_call_operand.hbm [shape: f32[2,24,128], index: 3, kind: output, shape index: {}]
  %s4 = sld [smem:[#allocation0]]
  $region45: #{tpu_custom_call.1} parent=0
    _
  %s6 = ssub.s32 1, %s4
  %s7 = scalar_select 0, %s6, %s4
  $region1: #{tpu_custom_call.1} parent=0
    #allocation2 [shape = 'u8[24576]{0}', space=vmem, size = 0x6000, scoped, tag = 'output window, operand 0']
    #allocation3 [shape = 's32[2]{0}', space=sflag, size = 0x8, scoped, tag = 'scoped memory for tpu_custom_call.1']
    %8 = vsyncpa [#allocation3], 0
    %s9 = scalar_lea.sflag [#allocation3], 1
    %10 = vsyncpa %s9, 0
    loop: start=0, step=1, limit=4
    $region2: #{tpu_custom_call.1} parent=1 // loop_pre_header
      _
    $region3: #{tpu_custom_call.1} parent=1 // loop_header
      %s12 = sphi 0, %s16
      %p13 = scmp.ge.s32.totalorder %s12, 4
      %s19 = sphi 0, %s31
      %s20 = sphi 0, %s27
      %s21 = sphi 0, %s19
      %s22 = sphi 0, %s20
      %s23 = sphi 0, %s21
      %s24 = sphi 0, %s22
      %s34 = sphi 0, %s36
      %s37 = sphi 0, %s34
      %s38 = sphi 0, %s37
      %s54 = sphi 0, %s38
      %s60 = sphi 0, %s62
      %s63 = sphi 0, %s60
      %s64 = sphi 0, %s63
      %s80 = sphi 0, %s64
      %s86 = sphi 0, %s88
      %s89 = sphi 0, %s86
      %s90 = sphi 0, %s89
      %s106 = sphi 0, %s90
      %s112 = sphi 0, %s114
      %s115 = sphi 0, %s112
      %s116 = sphi 0, %s115
      %s132 = sphi 0, %s116
    $region4: #{tpu_custom_call.1} parent=1 // loop_header_branch
      %15 = sbr.rel (%p13) target = $region8
    $region5: #{tpu_custom_call.1} parent=1 // loop_body
      %s17 = ssub.s32 %s12, 1
      %s18 = ssub.s32 %s12, 2
      %s25 = sadd.s32 1, %s20
      %p26 = scmp.ge.s32.totalorder %s25, 1
      %s27 = scalar_select %p26, 0, %s25
      %s28 = sadd.s32 1, %s19
      %s29 = scalar_select %p26, %s28, %s19
      %p30 = scmp.ge.s32.totalorder %s29, 2
      %s31 = scalar_select %p30, 0, %s29
      %s32 = ssub.s32 %s19, %s31
      %p33 = scmp.eq.s32.totalorder %s32, 0
      %s35 = sadd.s32 %s34, 1
      %s36 = scalar_select %p33, %s34, %s35
      %p39 = pneg %p33
      %p40 = scmp.eq.s32.totalorder %s12, 1
      %p41 = por %p39, %p40
      %p42 = scmp.ne.s32.totalorder %s34, %s37
      %p43 = scmp.eq.s32.totalorder %s12, 0
      %p44 = por %p42, %p43
      %p45 = scmp.ne.s32.totalorder %s34, %s37
      %p46 = scmp.eq.s32.totalorder %s17, 1
      %p47 = por %p45, %p46
      %p48 = scmp.ne.s32.totalorder %s37, %s38
      %p49 = scmp.eq.s32.totalorder %s17, 0
      %p50 = por %p48, %p49
      %p51 = scmp.ne.s32.totalorder %s37, %s38
      %p52 = scmp.eq.s32.totalorder %s18, 1
      %p53 = por %p51, %p52
      %p55 = scmp.ne.s32.totalorder %s38, %s54
      %p56 = scmp.eq.s32.totalorder %s18, 0
      %p57 = por %p55, %p56
      %s58 = ssub.s32 %s19, %s31
      %p59 = scmp.eq.s32.totalorder %s58, 0
      %s61 = sadd.s32 %s60, 1
      %s62 = scalar_select %p59, %s60, %s61
      %p65 = pneg %p59
      %p66 = scmp.eq.s32.totalorder %s12, 1
      %p67 = por %p65, %p66
      %p68 = scmp.ne.s32.totalorder %s60, %s63
      %p69 = scmp.eq.s32.totalorder %s12, 0
      %p70 = por %p68, %p69
      %p71 = scmp.ne.s32.totalorder %s60, %s63
      %p72 = scmp.eq.s32.totalorder %s17, 1
      %p73 = por %p71, %p72
      %p74 = scmp.ne.s32.totalorder %s63, %s64
      %p75 = scmp.eq.s32.totalorder %s17, 0
      %p76 = por %p74, %p75
      %p77 = scmp.ne.s32.totalorder %s63, %s64
      %p78 = scmp.eq.s32.totalorder %s18, 1
      %p79 = por %p77, %p78
      %p81 = scmp.ne.s32.totalorder %s64, %s80
      %p82 = scmp.eq.s32.totalorder %s18, 0
      %p83 = por %p81, %p82
      %s84 = ssub.s32 %s20, %s27
      %p85 = scmp.eq.s32.totalorder %s84, 0
      %s87 = sadd.s32 %s86, 1
      %s88 = scalar_select %p85, %s86, %s87
      %p91 = pneg %p85
      %p92 = scmp.eq.s32.totalorder %s12, 1
      %p93 = por %p91, %p92
      %p94 = scmp.ne.s32.totalorder %s86, %s89
      %p95 = scmp.eq.s32.totalorder %s12, 0
      %p96 = por %p94, %p95
      %p97 = scmp.ne.s32.totalorder %s86, %s89
      %p98 = scmp.eq.s32.totalorder %s17, 1
      %p99 = por %p97, %p98
      %p100 = scmp.ne.s32.totalorder %s89, %s90
      %p101 = scmp.eq.s32.totalorder %s17, 0
      %p102 = por %p100, %p101
      %p103 = scmp.ne.s32.totalorder %s89, %s90
      %p104 = scmp.eq.s32.totalorder %s18, 1
      %p105 = por %p103, %p104
      %p107 = scmp.ne.s32.totalorder %s90, %s106
      %p108 = scmp.eq.s32.totalorder %s18, 0
      %p109 = por %p107, %p108
      %s110 = ssub.s32 %s19, %s31
      %p111 = scmp.eq.s32.totalorder %s110, 0
      %s113 = sadd.s32 %s112, 1
      %s114 = scalar_select %p111, %s112, %s113
      %p117 = pneg %p111
      %p118 = scmp.eq.s32.totalorder %s12, 1
      %p119 = por %p117, %p118
      %p120 = scmp.ne.s32.totalorder %s112, %s115
      %p121 = scmp.eq.s32.totalorder %s12, 0
      %p122 = por %p120, %p121
      %p123 = scmp.ne.s32.totalorder %s112, %s115
      %p124 = scmp.eq.s32.totalorder %s17, 1
      %p125 = por %p123, %p124
      %p126 = scmp.ne.s32.totalorder %s115, %s116
      %p127 = scmp.eq.s32.totalorder %s17, 0
      %p128 = por %p126, %p127
      %p129 = scmp.ne.s32.totalorder %s115, %s116
      %p130 = scmp.eq.s32.totalorder %s18, 1
      %p131 = por %p129, %p130
      %p133 = scmp.ne.s32.totalorder %s116, %s132
      %p134 = scmp.eq.s32.totalorder %s18, 0
      %p135 = por %p133, %p134
      %p136 = scmp.le.s32.totalorder 1, %s12
      %p137 = scmp.lt.s32.totalorder %s12, 3
      %p138 = pnand %p136, %p137
      %p139 = pneg %p138
      // Predicated region
      $region9: #{tpu_custom_call.1} parent=5 // pred_check
        _
      $region10: #{tpu_custom_call.1} parent=5 // pred_check_branch
        %141 = sbr.rel (%p138) target = $region12
      $region11: #{tpu_custom_call.1} parent=5 // pred_region
        %s142 = ssub.s32 %s12, 1
        // Predicated region
        $region13: #{tpu_custom_call.1} parent=11 // pred_check
          %p143 = pneg %p102
        $region14: #{tpu_custom_call.1} parent=11 // pred_check_branch
          %145 = sbr.rel (%p143) target = $region16
        $region15: #{tpu_custom_call.1} parent=11 // pred_region
          %p146 = scmp.lt.s32.totalorder %s22, 0
          %s147 = scalar_select %p146, %s22, 0
          %s148 = smul.addr %s147, 16
          %s149 = smul.addr %s148, 4
          %s150 = scalar_lea.vmem %s2, %s149
        $region16: #{tpu_custom_call.1} parent=11 // pred_fallthru
          _
      $region12: #{tpu_custom_call.1} parent=5 // pred_fallthru
        _
      %p151 = scmp.lt.s32.totalorder %s12, 2
      // Predicated region
      $region17: #{tpu_custom_call.1} parent=5 // pred_check
        %p152 = pneg %p151
      $region18: #{tpu_custom_call.1} parent=5 // pred_check_branch
        %154 = sbr.rel (%p152) target = $region20
      $region19: #{tpu_custom_call.1} parent=5 // pred_region
        // Predicated region
        $region21: #{tpu_custom_call.1} parent=19 // pred_check
          %p155 = pneg %p44
        $region22: #{tpu_custom_call.1} parent=19 // pred_check_branch
          %157 = sbr.rel (%p155) target = $region24
        $region23: #{tpu_custom_call.1} parent=19 // pred_region
          %s158 = smul.u32 5, %s19
          %p159 = scmp.lt.s32.totalorder %s158, 9
          %s160 = scalar_select %p159, %s158, 9
          %s161 = smul.addr %s160, 4
          %s162 = scalar_lea.vmem %s0, %s161
          %s163 = smul.u32 5, %s19
        $region24: #{tpu_custom_call.1} parent=19 // pred_fallthru
          _
        // Predicated region
        $region25: #{tpu_custom_call.1} parent=19 // pred_check
          %p164 = pneg %p70
        $region26: #{tpu_custom_call.1} parent=19 // pred_check_branch
          %166 = sbr.rel (%p164) target = $region28
        $region27: #{tpu_custom_call.1} parent=19 // pred_region
          %s167 = smul.u32 5, %s19
          %p168 = scmp.lt.s32.totalorder %s167, 9
          %s169 = scalar_select %p168, %s167, 9
          %s170 = smul.addr %s169, 4
          %s171 = scalar_lea.vmem %s1, %s170
          %s172 = smul.u32 5, %s19
        $region28: #{tpu_custom_call.1} parent=19 // pred_fallthru
          _
      $region20: #{tpu_custom_call.1} parent=5 // pred_fallthru
        _
      %p173 = scmp.le.s32.totalorder 1, %s12
      %p174 = scmp.lt.s32.totalorder %s12, 3
      %p175 = pnand %p173, %p174
      %p176 = pneg %p175
      // Predicated region
      $region29: #{tpu_custom_call.1} parent=5 // pred_check
        _
      $region30: #{tpu_custom_call.1} parent=5 // pred_check_branch
        %178 = sbr.rel (%p175) target = $region32
      $region31: #{tpu_custom_call.1} parent=5 // pred_region
        %s179 = ssub.s32 %s12, 1
        %s180 = smul.u32 5, %s21
        %p181 = scmp.lt.s32.totalorder %s180, 9
        %s182 = scalar_select %p181, %s180, 9
        %s183 = smul.addr %s182, 4
        %s184 = scalar_lea.vmem %s0, %s183
        %p185 = pneg %p50
        %p186 = pneg %p47
        %s187 = smul.u32 5, %s21
        %p188 = scmp.lt.s32.totalorder %s187, 9
        %s189 = scalar_select %p188, %s187, 9
        %s190 = smul.addr %s189, 4
        %s191 = scalar_lea.vmem %s1, %s190
        %p192 = pneg %p76
        %p193 = pneg %p73
        %p194 = scmp.lt.s32.totalorder %s22, 0
        %s195 = scalar_select %p194, %s22, 0
        %s196 = smul.addr %s195, 16
        %s197 = smul.addr %s196, 4
        %s198 = scalar_lea.vmem %s2, %s197
        %p199 = pneg %p102
        %p200 = pneg %p99
        %p201 = pneg %p128
        %p202 = pneg %p125
        %s203 = sand.u32 %s115, 1
        %s204 = scalar_lea.sflag [#allocation3], %s203
        %s205 = sand.u32 %s115, 1
        %s206 = smul.addr %s205, 24
        %s207 = scalar_lea.vmem [#allocation2], %s206
        %s208 = smul.u32 5, %s21
        %p209 = scmp.lt.s32.totalorder %s208, 9
        %s210 = scalar_select %p209, %s208, 9
        %s211 = smul.addr %s210, 4
        %s212 = scalar_lea.vmem %s0, %s211
        %s213 = smul.u32 5, %s21
        %s214 = smul.u32 5, %s21
        %p215 = scmp.lt.s32.totalorder %s214, 9
        %s216 = scalar_select %p215, %s214, 9
        %s217 = smul.addr %s216, 4
        %s218 = scalar_lea.vmem %s1, %s217
        %s219 = smul.u32 5, %s21
        %p220 = scmp.lt.s32.totalorder %s22, 0
        %s221 = scalar_select %p220, %s22, 0
        %s222 = smul.addr %s221, 16
        %s223 = smul.addr %s222, 4
        %s224 = scalar_lea.vmem %s2, %s223
        %v226 = vld [vmem:[%s224] sm:$0xff]
        %v227 = vld [vmem:[%s224 + $0x8] sm:$0xff]
        %v228 = vld [vmem:[%s224 + $0x10] sm:$0xff]
        %v229 = vld [vmem:[%s224 + $0x18] sm:$0xff]
        %v230 = vld [vmem:[%s224 + $0x20] sm:$0xff]
        %v231 = vld [vmem:[%s224 + $0x28] sm:$0xff]
        %v232 = vld [vmem:[%s224 + $0x30] sm:$0xff]
        %v233 = vld [vmem:[%s224 + $0x38] sm:$0xff]
        %v234 = vld [vmem:[%s212] sm:$0xf]
        %v235 = vld [vmem:[%s212 + $0x4] sm:$0xf]
        %v236 = vld [vmem:[%s212 + $0x8] sm:$0xf]
        %v237 = vld [vmem:[%s212 + $0xc] sm:$0xf]
        %v238 = vld [vmem:[%s212 + $0x10] sm:$0xf]
        %v244 = vunpack.c.l.b16 %v234
        %v245 = vunpack.c.l.b16 %v235
        %v246 = vunpack.c.l.b16 %v236
        %v247 = vunpack.c.l.b16 %v237
        %v248 = vunpack.c.l.b16 %v238
        %v249 = vpack.c.b16 %v245, %v244
        %v250 = vpack.c.b16 %v247, %v246
        %v251 = vpack.c.b16 %v248, %v248
        %v260 = vunpack.c.l.b16 %v226
        %v261 = vunpack.c.h.b16 %v226
        %v262 = vunpack.c.l.b16 %v227
        %v263 = vunpack.c.h.b16 %v227
        %v264 = vunpack.c.l.b16 %v228
        %v265 = vunpack.c.h.b16 %v228
        %v266 = vunpack.c.l.b16 %v229
        %v267 = vunpack.c.h.b16 %v229
        %v268 = vunpack.c.l.b16 %v230
        %v269 = vunpack.c.h.b16 %v230
        %v270 = vunpack.c.l.b16 %v231
        %v271 = vunpack.c.h.b16 %v231
        %v272 = vunpack.c.l.b16 %v232
        %v273 = vunpack.c.h.b16 %v232
        %v274 = vunpack.c.l.b16 %v233
        %v275 = vunpack.c.h.b16 %v233
        %v276 = vpack.c.b16 %v262, %v260
        %v277 = vpack.c.b16 %v263, %v261
        %v278 = vpack.c.b16 %v266, %v264
        %v279 = vpack.c.b16 %v267, %v265
        %v280 = vpack.c.b16 %v270, %v268
        %v281 = vpack.c.b16 %v271, %v269
        %v282 = vpack.c.b16 %v274, %v272
        %v283 = vpack.c.b16 %v275, %v273
        %vm292 = vcmask 523264
        %v294 = vsel %vm292, %v249, 0
        %v297 = vsel %vm292, %v250, 0
        %v300 = vsel %vm292, %v251, 0
        %302 = vmatprep.subr.bf16.mxu0 %v277
        %303 = vmatpush1.bf16.msra.mxu0 %v276
        %304 = vmatprep.subr.bf16.mxu0 %v279
        %305 = vmatpush1.bf16.msra.mxu0 %v278
        %306 = vmatprep.subr.bf16.mxu0 %v281
        %307 = vmatpush1.bf16.msra.mxu0 %v280
        %308 = vmatprep.subr.bf16.mxu0 %v283
        %309 = vmatpush1.bf16.msra.mxu0 %v282
        %310 = vmatprep.subr.bf16.mxu0 0
        %311 = vmatpush1.bf16.msra.mxu0 0
        %312 = vmatprep.subr.bf16.mxu0 0
        %313 = vmatpush1.bf16.msra.mxu0 0
        %314 = vmatprep.subr.bf16.mxu0 0
        %315 = vmatpush1.bf16.msra.mxu0 0
        %316 = vmatprep.subr.bf16.mxu0 0
        %317 = vmatpush1.bf16.msra.mxu0 0
        %318 = vmatprep.subr.bf16.mxu0 0
        %319 = vmatpush1.bf16.msra.mxu0 0
        %320 = vmatprep.subr.bf16.mxu0 0
        %321 = vmatpush1.bf16.msra.mxu0 0
        %322 = vmatprep.subr.bf16.mxu0 0
        %323 = vmatpush1.bf16.msra.mxu0 0
        %324 = vmatprep.subr.bf16.mxu0 0
        %325 = vmatpush1.bf16.msra.mxu0 0
        %326 = vmatprep.subr.bf16.mxu0 0
        %327 = vmatpush1.bf16.msra.mxu0 0
        %328 = vmatprep.subr.bf16.mxu0 0
        %329 = vmatpush1.bf16.msra.mxu0 0
        %330 = vmatprep.subr.bf16.mxu0 0
        %331 = vmatpush1.bf16.msra.mxu0 0
        %332 = vmatprep.subr.bf16.mxu0 0
        %333 = vmatpush1.bf16.msra.mxu0 0
        %334 = vmatprep.mubr.bf16.mxu0 0
        %335 = vmatmul.mubr.bf16.gmra.mrb[0].mxu0 %v294
        %v336 = vpop.f32.mrb[0].mxu0
        %v337 = vadd.f32 0.0, %v336
        %v338 = vpop.f32.mrb[0].mxu0
        %v339 = vadd.f32 0.0, %v338
        %v340 = vpop.f32.mrb[0].mxu0
        %v341 = vadd.f32 0.0, %v340
        %v342 = vpop.f32.mrb[0].mxu0
        %v343 = vadd.f32 0.0, %v342
        %344 = vmatprep.mubr.bf16.mxu0 0
        %345 = vmatmul.mubr.bf16.gmra.mrb[0].mxu0 %v297
        %v346 = vpop.f32.mrb[0].mxu0
        %v347 = vadd.f32 0.0, %v346
        %v348 = vpop.f32.mrb[0].mxu0
        %v349 = vadd.f32 0.0, %v348
        %v350 = vpop.f32.mrb[0].mxu0
        %v351 = vadd.f32 0.0, %v350
        %v352 = vpop.f32.mrb[0].mxu0
        %v353 = vadd.f32 0.0, %v352
        %354 = vmatprep.mubr.bf16.mxu0 0
        %355 = vmatmul.mubr.bf16.gmra.mrb[0].mxu0 %v300
        %v356 = vpop.f32.mrb[0].mxu0
        %v357 = vadd.f32 0.0, %v356
        %v358 = vpop.f32.mrb[0].mxu0
        %v359 = vadd.f32 0.0, %v358
        %v360 = vpop.f32.mrb[0].mxu0
        %v361 = vpop.f32.mrb[0].mxu0
        %362 = vdwg.mxu0
        %v363 = vld [vmem:[%s218] sm:$0xf]
        %v364 = vld [vmem:[%s218 + $0x4] sm:$0xf]
        %v365 = vld [vmem:[%s218 + $0x8] sm:$0xf]
        %v366 = vld [vmem:[%s218 + $0xc] sm:$0xf]
        %v367 = vld [vmem:[%s218 + $0x10] sm:$0xf]
        %v373 = vunpack.c.l.b16 %v363
        %v374 = vunpack.c.l.b16 %v364
        %v375 = vunpack.c.l.b16 %v365
        %v376 = vunpack.c.l.b16 %v366
        %v377 = vunpack.c.l.b16 %v367
        %v378 = vpack.c.b16 %v374, %v373
        %v379 = vpack.c.b16 %v376, %v375
        %v380 = vpack.c.b16 %v377, %v377
        %v382 = vsel %vm292, %v378, 0
        %v385 = vsel %vm292, %v379, 0
        %v388 = vsel %vm292, %v380, 0
        %390 = vmatprep.subr.bf16.mxu0 %v277
        %391 = vmatpush1.bf16.msra.mxu0 %v276
        %392 = vmatprep.subr.bf16.mxu0 %v279
        %393 = vmatpush1.bf16.msra.mxu0 %v278
        %394 = vmatprep.subr.bf16.mxu0 %v281
        %395 = vmatpush1.bf16.msra.mxu0 %v280
        %396 = vmatprep.subr.bf16.mxu0 %v283
        %397 = vmatpush1.bf16.msra.mxu0 %v282
        %398 = vmatprep.subr.bf16.mxu0 0
        %399 = vmatpush1.bf16.msra.mxu0 0
        %400 = vmatprep.subr.bf16.mxu0 0
        %401 = vmatpush1.bf16.msra.mxu0 0
        %402 = vmatprep.subr.bf16.mxu0 0
        %403 = vmatpush1.bf16.msra.mxu0 0
        %404 = vmatprep.subr.bf16.mxu0 0
        %405 = vmatpush1.bf16.msra.mxu0 0
        %406 = vmatprep.subr.bf16.mxu0 0
        %407 = vmatpush1.bf16.msra.mxu0 0
        %408 = vmatprep.subr.bf16.mxu0 0
        %409 = vmatpush1.bf16.msra.mxu0 0
        %410 = vmatprep.subr.bf16.mxu0 0
        %411 = vmatpush1.bf16.msra.mxu0 0
        %412 = vmatprep.subr.bf16.mxu0 0
        %413 = vmatpush1.bf16.msra.mxu0 0
        %414 = vmatprep.subr.bf16.mxu0 0
        %415 = vmatpush1.bf16.msra.mxu0 0
        %416 = vmatprep.subr.bf16.mxu0 0
        %417 = vmatpush1.bf16.msra.mxu0 0
        %418 = vmatprep.subr.bf16.mxu0 0
        %419 = vmatpush1.bf16.msra.mxu0 0
        %420 = vmatprep.subr.bf16.mxu0 0
        %421 = vmatpush1.bf16.msra.mxu0 0
        %422 = vmatprep.mubr.bf16.mxu0 0
        %423 = vmatmul.mubr.bf16.gmra.mrb[0].mxu0 %v382
        %v424 = vpop.f32.mrb[0].mxu0
        %v425 = vadd.f32 0.0, %v424
        %v426 = vpop.f32.mrb[0].mxu0
        %v427 = vadd.f32 0.0, %v426
        %v428 = vpop.f32.mrb[0].mxu0
        %v429 = vadd.f32 0.0, %v428
        %v430 = vpop.f32.mrb[0].mxu0
        %v431 = vadd.f32 0.0, %v430
        %432 = vmatprep.mubr.bf16.mxu0 0
        %433 = vmatmul.mubr.bf16.gmra.mrb[0].mxu0 %v385
        %v434 = vpop.f32.mrb[0].mxu0
        %v435 = vadd.f32 0.0, %v434
        %v436 = vpop.f32.mrb[0].mxu0
        %v437 = vadd.f32 0.0, %v436
        %v438 = vpop.f32.mrb[0].mxu0
        %v439 = vadd.f32 0.0, %v438
        %v440 = vpop.f32.mrb[0].mxu0
        %v441 = vadd.f32 0.0, %v440
        %442 = vmatprep.mubr.bf16.mxu0 0
        %443 = vmatmul.mubr.bf16.gmra.mrb[0].mxu0 %v388
        %v444 = vpop.f32.mrb[0].mxu0
        %v445 = vadd.f32 0.0, %v444
        %v446 = vpop.f32.mrb[0].mxu0
        %v447 = vadd.f32 0.0, %v446
        %v448 = vpop.f32.mrb[0].mxu0
        %v449 = vpop.f32.mrb[0].mxu0
        %450 = vdwg.mxu0
        %v451 = vmul.f32 %v337, %v337
        %v452 = vmul.f32 %v341, %v341
        %v453 = vmul.f32 %v347, %v347
        %v454 = vmul.f32 %v351, %v351
        %v455 = vmul.f32 %v357, %v357
        %v456 = vmul.f32 %v339, %v339
        %v457 = vmul.f32 %v343, %v343
        %v458 = vmul.f32 %v349, %v349
        %v459 = vmul.f32 %v353, %v353
        %v460 = vmul.f32 %v359, %v359
        %v461 = vadd.f32 %v451, %v456
        %v462 = vadd.f32 %v452, %v457
        %v463 = vadd.f32 %v453, %v458
        %v464 = vadd.f32 %v454, %v459
        %v465 = vadd.f32 %v455, %v460
        %v466 = vmax.f32 %v461, 1e-07
        %v467 = vmax.f32 %v462, 1e-07
        %v468 = vmax.f32 %v463, 1e-07
        %v469 = vmax.f32 %v464, 1e-07
        %v470 = vmax.f32 %v465, 1e-07
        %v471 = vmul.f32 %v425, %v425
        %v472 = vmul.f32 %v429, %v429
        %v473 = vmul.f32 %v435, %v435
        %v474 = vmul.f32 %v439, %v439
        %v475 = vmul.f32 %v445, %v445
        %v476 = vmul.f32 %v427, %v427
        %v477 = vmul.f32 %v431, %v431
        %v478 = vmul.f32 %v437, %v437
        %v479 = vmul.f32 %v441, %v441
        %v480 = vmul.f32 %v447, %v447
        %v481 = vadd.f32 %v471, %v476
        %v482 = vadd.f32 %v472, %v477
        %v483 = vadd.f32 %v473, %v478
        %v484 = vadd.f32 %v474, %v479
        %v485 = vadd.f32 %v475, %v480
        %v486 = vmax.f32 %v481, 1e-07
        %v487 = vmax.f32 %v482, 1e-07
        %v488 = vmax.f32 %v483, 1e-07
        %v489 = vmax.f32 %v484, 1e-07
        %v490 = vmax.f32 %v485, 1e-07
        %v491 = vrsqrt.pop %v486
        %v492 = vmul.f32 %v486, %v491
        %vm493 = vcmp.eq.f32.partialorder %v486, inf
        %v494 = vsel %vm493, %v486, %v492
        %vm495 = vcmp.eq.f32.partialorder %v486, 0.0
        %v496 = vand.u32 %v486, 2147483648
        %v497 = vsel %vm495, %v496, %v494
        %v498 = vrsqrt.pop %v487
        %v499 = vmul.f32 %v487, %v498
        %vm500 = vcmp.eq.f32.partialorder %v487, inf
        %v501 = vsel %vm500, %v487, %v499
        %vm502 = vcmp.eq.f32.partialorder %v487, 0.0
        %v503 = vand.u32 %v487, 2147483648
        %v504 = vsel %vm502, %v503, %v501
        %v505 = vrsqrt.pop %v488
        %v506 = vmul.f32 %v488, %v505
        %vm507 = vcmp.eq.f32.partialorder %v488, inf
        %v508 = vsel %vm507, %v488, %v506
        %vm509 = vcmp.eq.f32.partialorder %v488, 0.0
        %v510 = vand.u32 %v488, 2147483648
        %v511 = vsel %vm509, %v510, %v508
        %v512 = vrsqrt.pop %v489
        %v513 = vmul.f32 %v489, %v512
        %vm514 = vcmp.eq.f32.partialorder %v489, inf
        %v515 = vsel %vm514, %v489, %v513
        %vm516 = vcmp.eq.f32.partialorder %v489, 0.0
        %v517 = vand.u32 %v489, 2147483648
        %v518 = vsel %vm516, %v517, %v515
        %v519 = vrsqrt.pop %v490
        %v520 = vmul.f32 %v490, %v519
        %vm521 = vcmp.eq.f32.partialorder %v490, inf
        %v522 = vsel %vm521, %v490, %v520
        %vm523 = vcmp.eq.f32.partialorder %v490, 0.0
        %v524 = vand.u32 %v490, 2147483648
        %v525 = vsel %vm523, %v524, %v522
        %v526 = vrsqrt.pop %v466
        %v527 = vmul.f32 %v466, %v526
        %vm528 = vcmp.eq.f32.partialorder %v466, inf
        %v529 = vsel %vm528, %v466, %v527
        %vm530 = vcmp.eq.f32.partialorder %v466, 0.0
        %v531 = vand.u32 %v466, 2147483648
        %v532 = vsel %vm530, %v531, %v529
        %v533 = vrsqrt.pop %v467
        %v534 = vmul.f32 %v467, %v533
        %vm535 = vcmp.eq.f32.partialorder %v467, inf
        %v536 = vsel %vm535, %v467, %v534
        %vm537 = vcmp.eq.f32.partialorder %v467, 0.0
        %v538 = vand.u32 %v467, 2147483648
        %v539 = vsel %vm537, %v538, %v536
        %v540 = vrsqrt.pop %v468
        %v541 = vmul.f32 %v468, %v540
        %vm542 = vcmp.eq.f32.partialorder %v468, inf
        %v543 = vsel %vm542, %v468, %v541
        %vm544 = vcmp.eq.f32.partialorder %v468, 0.0
        %v545 = vand.u32 %v468, 2147483648
        %v546 = vsel %vm544, %v545, %v543
        %v547 = vrsqrt.pop %v469
        %v548 = vmul.f32 %v469, %v547
        %vm549 = vcmp.eq.f32.partialorder %v469, inf
        %v550 = vsel %vm549, %v469, %v548
        %vm551 = vcmp.eq.f32.partialorder %v469, 0.0
        %v552 = vand.u32 %v469, 2147483648
        %v553 = vsel %vm551, %v552, %v550
        %v554 = vrsqrt.pop %v470
        %v555 = vmul.f32 %v470, %v554
        %vm556 = vcmp.eq.f32.partialorder %v470, inf
        %v557 = vsel %vm556, %v470, %v555
        %vm558 = vcmp.eq.f32.partialorder %v470, 0.0
        %v559 = vand.u32 %v470, 2147483648
        %v560 = vsel %vm558, %v559, %v557
        %v561 = vsub.f32 %v497, %v532
        %v562 = vsub.f32 %v504, %v539
        %v563 = vsub.f32 %v511, %v546
        %v564 = vsub.f32 %v518, %v553
        %v565 = vsub.f32 %v525, %v560
        %v566 = vmul.f32 %v561, %v561
        %v567 = vmul.f32 %v562, %v562
        %v568 = vmul.f32 %v563, %v563
        %v569 = vmul.f32 %v564, %v564
        %v570 = vmul.f32 %v565, %v565
        %v571 = vrcp.pop %v466
        %v572 = vmul.f32 %v486, %v571
        %v573 = vrcp.pop %v467
        %v574 = vmul.f32 %v487, %v573
        %v575 = vrcp.pop %v468
        %v576 = vmul.f32 %v488, %v575
        %v577 = vrcp.pop %v469
        %v578 = vmul.f32 %v489, %v577
        %v579 = vrcp.pop %v470
        %v580 = vmul.f32 %v490, %v579
        %v581 = vlog2.pop %v572
        %v582 = vmul.f32 %v581, 0.6931472
        %v583 = vlog2.pop %v574
        %v584 = vmul.f32 %v583, 0.6931472
        %v585 = vlog2.pop %v576
        %v586 = vmul.f32 %v585, 0.6931472
        %v587 = vlog2.pop %v578
        %v588 = vmul.f32 %v587, 0.6931472
        %v589 = vlog2.pop %v580
        %v590 = vmul.f32 %v589, 0.6931472
        %v591 = vand.u32 2147483647, %v582
        %v592 = vand.u32 2147483647, %v584
        %v593 = vand.u32 2147483647, %v586
        %v594 = vand.u32 2147483647, %v588
        %v595 = vand.u32 2147483647, %v590
        %v596 = vmul.f32 %v591, 0.5
        %v597 = vmul.f32 %v592, 0.5
        %v598 = vmul.f32 %v593, 0.5
        %v599 = vmul.f32 %v594, 0.5
        %v600 = vmul.f32 %v595, 0.5
        %v601 = vadd.f32 %v566, %v567
        %v602 = vadd.f32 %v601, %v568
        %v603 = vadd.f32 %v602, %v569
        %v604 = vadd.f32 %v603, %v570
        %v605 = vadd.f32 %v486, %v487
        %v606 = vadd.f32 %v605, %v488
        %v607 = vadd.f32 %v606, %v489
        %v608 = vadd.f32 %v607, %v490
        %v609 = vadd.f32 %v596, %v597
        %v610 = vadd.f32 %v609, %v598
        %v611 = vadd.f32 %v610, %v599
        %v612 = vadd.f32 %v611, %v600
        %613 = vst [vmem:[%s207] sm:$0xff] %v604
        %614 = vst [vmem:[%s207 + $0x8] sm:$0xff] %v608
        %615 = vst [vmem:[%s207 + $0x10] sm:$0xff] %v612
        %s616 = sand.u32 %s115, 1
        %s617 = scalar_lea.sflag [#allocation3], %s616
        %s618 = sand.u32 %s115, 1
        %s619 = smul.addr %s618, 24
        %s620 = scalar_lea.vmem [#allocation2], %s619
        // Predicated region
        $region33: #{tpu_custom_call.1} parent=31 // pred_check
          %p621 = pneg %p125
        $region34: #{tpu_custom_call.1} parent=31 // pred_check_branch
          %623 = sbr.rel (%p621) target = $region36
        $region35: #{tpu_custom_call.1} parent=31 // pred_region
          %s625 = ssub.s32 384, 384
          %626 = vsyncadd %s617, %s625
          %s627 = smul.addr %s21, 3
          %s628 = smul.addr %s627, 128
          %s629 = scalar_lea.hbm %s3, %s628
          %s630 = sshll.u32 %s620, 4
          %s631 = int_to_ptr.vmem [resolvable:$true] %s630
          %636 = dma.vmem_to_hbm [thread:$0]  %s631, 384, %s629, %s617, 128, 128, 8
        $region36: #{tpu_custom_call.1} parent=31 // pred_fallthru
          _
      $region32: #{tpu_custom_call.1} parent=5 // pred_fallthru
        _
      %p637 = scmp.le.s32.totalorder 2, %s12
      // Predicated region
      $region37: #{tpu_custom_call.1} parent=5 // pred_check
        %p638 = pneg %p637
      $region38: #{tpu_custom_call.1} parent=5 // pred_check_branch
        %640 = sbr.rel (%p638) target = $region40
      $region39: #{tpu_custom_call.1} parent=5 // pred_region
        %s641 = ssub.s32 %s12, 2
        // Predicated region
        $region41: #{tpu_custom_call.1} parent=39 // pred_check
          %p642 = pneg %p131
        $region42: #{tpu_custom_call.1} parent=39 // pred_check_branch
          %644 = sbr.rel (%p642) target = $region44
        $region43: #{tpu_custom_call.1} parent=39 // pred_region
          %s645 = sand.u32 %s116, 1
          %s646 = scalar_lea.sflag [#allocation3], %s645
          %s647 = sand.u32 %s116, 1
          %s648 = smul.addr %s647, 24
          %s649 = scalar_lea.vmem [#allocation2], %s648
          %650 = dma.done %s646, 384
        $region44: #{tpu_custom_call.1} parent=39 // pred_fallthru
          _
      $region40: #{tpu_custom_call.1} parent=5 // pred_fallthru
        _
    $region6: #{tpu_custom_call.1} parent=1 // loop_footer
      %s16 = sadd.s32 1, %s12
    $region7: #{tpu_custom_call.1} parent=1 // loop_footer_branch
      %11 = sbr.rel target = $region3
    $region8: #{tpu_custom_call.1} parent=1 // loop_exit
      _
    %651 = vsyncpa [#allocation3], 1
    %s652 = scalar_lea.sflag [#allocation3], 1
    %653 = vsyncpa %s652, 1

</llo_original>
